<compile_context>
chip_gen: v7x
topology: tpu7x:2x2x1
jax: 0.10.0
libtpu: 0.0.40
codegen_flags: <defaults>
</compile_context>

<pallas_src>
import jax
import jax.numpy as jnp
from jax.experimental import pallas as pl
from jax.experimental.pallas import tpu as pltpu

INPUT_SIZE = 6
HIDDEN = (256, 256)
OUTPUT_SIZE = 1


def _com_speed_kernel(scal_ref,            # SMEM (5,): [n, k1, k2, b13, b23]
                      dif_ref,             # (TB, 1) f32
                      hh_ref,              # (TB, 1) f32  (h1_h2[:, 0:1])
                      x_ref,               # (TB, 6) bf16
                      w1_ref,              # (6, 512) bf16  = [w11 | w21]
                      b1_ref,              # (1, 512) f32   = [b11 | b21]
                      w12_ref,             # (256, 256) bf16
                      w22_ref,             # (256, 256) bf16
                      b2_ref,              # (1, 512) f32   = [b12 | b22]
                      w3_ref,              # (2, 256) f32   = [w13_row ; w23_row]
                      out_ref):            # (TB, 1) f32
    n, k1, k2 = scal_ref[0], scal_ref[1], scal_ref[2]
    b13, b23 = scal_ref[3], scal_ref[4]
    H = HIDDEN[0]

    x = x_ref[...]                                             # (TB, 6) bf16

    def branch(w1, b1, w2_ref, b2, w3_row, b3):
        # Layer 1 on the MXU: (TB,6)@(6,256) -> f32, bias + ReLU.
        h = jnp.dot(x, w1, preferred_element_type=jnp.float32)
        h = jnp.maximum(h + b1, 0.0).astype(jnp.bfloat16)      # (TB, 256)
        # Layer 2: dense 256x256 bf16 MXU matmul with f32 accumulation.
        h2 = jnp.maximum(
            jnp.dot(h, w2_ref[...], preferred_element_type=jnp.float32) + b2,
            0.0)                                               # (TB, 256) f32
        # N=1 head: VPU multiply + lane reduce (avoid padded N=1 MXU pass).
        return jnp.sum(h2 * w3_row, axis=-1, keepdims=True) + b3   # (TB, 1)

    # Branch-sequential: only one branch's (TB,256) intermediates live at a
    # time.  Column slices land on 256-lane boundaries -> free views.
    o1 = branch(w1_ref[:, :H], b1_ref[:, :H], w12_ref, b2_ref[:, :H],
                w3_ref[0:1, :], b13)
    o2 = branch(w1_ref[:, H:], b1_ref[:, H:], w22_ref, b2_ref[:, H:],
                w3_ref[1:2, :], b23)

    coef = n / jnp.maximum(n - 1.0, 0.1)                       # clamp(n-1, 0.1)
    w_com = jnp.maximum(coef * (k1 * dif_ref[...]) + o1, 0.0)  # clamp(min=0)
    out_ref[...] = w_com / hh_ref[...] * k2 + o2


def com_speed_forward(params, dif_temp_p_h, h1_h2, use_x1, *, tile_b=None):
    """Returns compressor_speed of shape (B,)."""
    B = use_x1.shape[0]
    H = HIDDEN[0]

    if tile_b is None:
        # >= 2 grid steps once there is enough work (v7x megacore + pipelining
        # overlap); tiles in [512, 1024] rows at mid/large B, single tile for
        # tiny batches.  <=1024 keeps peak VMEM far under v5e's 16 MiB scoped
        # default; >=512 amortizes the ~0.35 us per-step overhead.
        if B <= 512:
            tile_b = max(256, 256 * pl.cdiv(B, 256))
        else:
            tile_b = min(1024, 512 * pl.cdiv(pl.cdiv(B, 2), 512))
    nb = pl.cdiv(B, tile_b)
    Bp = nb * tile_b

    # --- pack parameters ---
    scal = jnp.stack([
        jnp.asarray(params["n"], jnp.float32).reshape(()),
        jnp.asarray(params["k1"], jnp.float32).reshape(()),
        jnp.asarray(params["k2"], jnp.float32).reshape(()),
        jnp.asarray(params["b13"], jnp.float32).reshape(()),
        jnp.asarray(params["b23"], jnp.float32).reshape(()),
    ])
    w1_cat = jnp.concatenate([params["w11"], params["w21"]], axis=1).astype(jnp.bfloat16)
    b1_cat = jnp.concatenate([params["b11"], params["b21"]], axis=1).astype(jnp.float32)
    w12 = params["w12"].astype(jnp.bfloat16)
    w22 = params["w22"].astype(jnp.bfloat16)
    b2_cat = jnp.concatenate([params["b12"], params["b22"]], axis=1).astype(jnp.float32)
    w3_cat = jnp.stack(
        [params["w13"][:, 0], params["w23"][:, 0]], axis=0).astype(jnp.float32)

    # --- prepare / pad batch inputs ---
    dif = dif_temp_p_h.reshape(B, 1).astype(jnp.float32)
    hh = h1_h2[:, 0:1].astype(jnp.float32)          # only column 0 is used
    x = use_x1.astype(jnp.bfloat16)
    if Bp != B:
        pad = Bp - B
        dif = jnp.pad(dif, ((0, pad), (0, 0)))
        hh = jnp.pad(hh, ((0, pad), (0, 0)), constant_values=1.0)  # avoid 0/0
        x = jnp.pad(x, ((0, pad), (0, 0)))

    smem = pl.BlockSpec(memory_space=pltpu.MemorySpace.SMEM)
    in_specs = [
        smem,                                                        # scalars
        pl.BlockSpec((tile_b, 1), lambda i: (i, 0)),                 # dif
        pl.BlockSpec((tile_b, 1), lambda i: (i, 0)),                 # hh
        pl.BlockSpec((tile_b, INPUT_SIZE), lambda i: (i, 0)),        # x
        pl.BlockSpec((INPUT_SIZE, 2 * H), lambda i: (0, 0)),         # w1_cat
        pl.BlockSpec((1, 2 * H), lambda i: (0, 0)),                  # b1_cat
        pl.BlockSpec((H, H), lambda i: (0, 0)),                      # w12
        pl.BlockSpec((H, H), lambda i: (0, 0)),                      # w22
        pl.BlockSpec((1, 2 * H), lambda i: (0, 0)),                  # b2_cat
        pl.BlockSpec((2, H), lambda i: (0, 0)),                      # w3_cat
    ]
    # TODO(synk): if profiling ever shows the masked (TB,1) vst.msk stores on
    # the critical path, switch dif/hh/out to a lane-dense (Bp//128, 128)
    # layout per the perf review.
    out_specs = pl.BlockSpec((tile_b, 1), lambda i: (i, 0))

    def _nbytes(a):
        return int(a.size) * int(a.dtype.itemsize)

    flops = 2 * Bp * (INPUT_SIZE * 2 * H + 2 * H * H) + 2 * Bp * 2 * H
    bytes_accessed = (
        sum(_nbytes(a) for a in
            (scal, dif, hh, x, w1_cat, b1_cat, w12, w22, b2_cat, w3_cat))
        + Bp * 4)  # output

    out = pl.pallas_call(
        _com_speed_kernel,
        out_shape=jax.ShapeDtypeStruct((Bp, 1), jnp.float32),
        grid=(nb,),
        in_specs=in_specs,
        out_specs=out_specs,
        compiler_params=pltpu.CompilerParams(
            dimension_semantics=("parallel",),
            vmem_limit_bytes=64 * 1024 * 1024),
        cost_estimate=pl.CostEstimate(
            flops=int(flops),
            transcendentals=0,
            bytes_accessed=int(bytes_accessed)),
    )(scal, dif, hh, x, w1_cat, b1_cat, w12, w22, b2_cat, w3_cat)

    return out[:B, 0]


def _xavier_uniform(key, fan_in, fan_out):
    bound = jnp.sqrt(6.0 / (fan_in + fan_out))
    # stored as (in, out) so the kernel computes x @ W
    return jax.random.uniform(key, (fan_in, fan_out), jnp.float32, -bound, bound)


def init_params(key):
    ks = jax.random.split(key, 8)
    return {
        "n": jnp.asarray(2.0, jnp.float32),
        "k1": jax.random.uniform(ks[0], (), jnp.float32),   # torch.rand(1)
        "k2": jax.random.uniform(ks[1], (), jnp.float32),
        # branch b1
        "w11": _xavier_uniform(ks[2], INPUT_SIZE, HIDDEN[0]),
        "b11": jnp.zeros((1, HIDDEN[0]), jnp.float32),
        "w12": _xavier_uniform(ks[3], HIDDEN[0], HIDDEN[1]),
        "b12": jnp.zeros((1, HIDDEN[1]), jnp.float32),
        "w13": _xavier_uniform(ks[4], HIDDEN[1], OUTPUT_SIZE),
        "b13": jnp.zeros((), jnp.float32),
        # branch b2
        "w21": _xavier_uniform(ks[5], INPUT_SIZE, HIDDEN[0]),
        "b21": jnp.zeros((1, HIDDEN[0]), jnp.float32),
        "w22": _xavier_uniform(ks[6], HIDDEN[0], HIDDEN[1]),
        "b22": jnp.zeros((1, HIDDEN[1]), jnp.float32),
        "w23": _xavier_uniform(ks[7], HIDDEN[1], OUTPUT_SIZE),
        "b23": jnp.zeros((), jnp.float32),
    }


def _reference(params, dif, hh, x):
    """Pure-JAX f32 reference of the PyTorch forward (eval mode)."""
    def mlp(x, w1, b1, w2, b2, w3, b3):
        h = jnp.maximum(x @ w1 + b1, 0.0)
        h = jnp.maximum(h @ w2 + b2, 0.0)
        return h @ w3 + b3
    o1 = mlp(x, params["w11"], params["b11"], params["w12"], params["b12"],
             params["w13"], params["b13"])
    o2 = mlp(x, params["w21"], params["b21"], params["w22"], params["b22"],
             params["w23"], params["b23"])
    n, k1, k2 = params["n"], params["k1"], params["k2"]
    w_com = jnp.maximum(n / jnp.maximum(n - 1.0, 0.1) * (k1 * dif[:, None]) + o1, 0.0)
    return w_com[:, 0] / hh[:, 0] * k2 + o2[:, 0]


if __name__ == "__main__":
    key = jax.random.PRNGKey(0)
    kp, kd, kh, kx = jax.random.split(key, 4)

    B = 8
    params = init_params(kp)
    dif_temp_p_h = jax.random.normal(kd, (B,), jnp.float32)
    h1_h2 = jax.random.uniform(kh, (B, 2), jnp.float32, 0.5, 2.0)  # avoid /0
    use_x1 = jax.random.normal(kx, (B, INPUT_SIZE), jnp.float32)

    out = com_speed_forward(params, dif_temp_p_h, h1_h2, use_x1)
    out = jax.block_until_ready(out)

    ref = _reference(params, dif_temp_p_h, h1_h2, use_x1)
    assert out.shape == (B,)
    # bf16 matmuls with f32 accumulation -> relaxed tolerance vs. f32 reference.
    assert jnp.allclose(out, ref, atol=5e-2, rtol=5e-2), (out, ref)

    print("KERNEL_OK")
</pallas_src>

<mosaic_0001>
module attributes {stable_mosaic.version = 11 : i64} {
  func.func @_com_speed_kernel(%arg0: i32, %arg1: memref<5xf32, #tpu.memory_space<smem>>, %arg2: memref<256x1xf32, #tpu.memory_space<vmem>>, %arg3: memref<256x1xf32, #tpu.memory_space<vmem>>, %arg4: memref<256x6xbf16, #tpu.memory_space<vmem>>, %arg5: memref<6x512xbf16, #tpu.memory_space<vmem>>, %arg6: memref<1x512xf32, #tpu.memory_space<vmem>>, %arg7: memref<256x256xbf16, #tpu.memory_space<vmem>>, %arg8: memref<256x256xbf16, #tpu.memory_space<vmem>>, %arg9: memref<1x512xf32, #tpu.memory_space<vmem>>, %arg10: memref<2x256xf32, #tpu.memory_space<vmem>>, %arg11: memref<256x1xf32, #tpu.memory_space<vmem>>) attributes {dimension_semantics = [#tpu.dimension_semantics<parallel>], iteration_bounds = array<i64: 1>, scalar_prefetch = 0 : i64, scratch_operands = 0 : i64, tpu.core_type = #tpu.core_type<tc>, window_params = [{transform_indices = @transform_0, window_bounds = array<i64: 5>}, {transform_indices = @transform_1, window_bounds = array<i64: 256, 1>}, {transform_indices = @transform_2, window_bounds = array<i64: 256, 1>}, {transform_indices = @transform_3, window_bounds = array<i64: 256, 6>}, {pipeline_mode = #tpu.pipeline_mode<synchronous>, transform_indices = @transform_4, window_bounds = array<i64: 6, 512>}, {pipeline_mode = #tpu.pipeline_mode<synchronous>, transform_indices = @transform_5, window_bounds = array<i64: 1, 512>}, {pipeline_mode = #tpu.pipeline_mode<synchronous>, transform_indices = @transform_6, window_bounds = array<i64: 256, 256>}, {pipeline_mode = #tpu.pipeline_mode<synchronous>, transform_indices = @transform_7, window_bounds = array<i64: 256, 256>}, {pipeline_mode = #tpu.pipeline_mode<synchronous>, transform_indices = @transform_8, window_bounds = array<i64: 1, 512>}, {pipeline_mode = #tpu.pipeline_mode<synchronous>, transform_indices = @transform_9, window_bounds = array<i64: 2, 256>}, {transform_indices = @transform_10, window_bounds = array<i64: 256, 1>}]} {
    %c0 = arith.constant 0 : index
    %0 = memref.load %arg1[%c0] : memref<5xf32, #tpu.memory_space<smem>>
    %c1 = arith.constant 1 : index
    %1 = memref.load %arg1[%c1] : memref<5xf32, #tpu.memory_space<smem>>
    %c2 = arith.constant 2 : index
    %2 = memref.load %arg1[%c2] : memref<5xf32, #tpu.memory_space<smem>>
    %c3 = arith.constant 3 : index
    %3 = memref.load %arg1[%c3] : memref<5xf32, #tpu.memory_space<smem>>
    %c4 = arith.constant 4 : index
    %4 = memref.load %arg1[%c4] : memref<5xf32, #tpu.memory_space<smem>>
    %c0_0 = arith.constant 0 : index
    %c0_1 = arith.constant 0 : index
    %5 = vector.load %arg4[%c0_0, %c0_1] : memref<256x6xbf16, #tpu.memory_space<vmem>>, vector<256x6xbf16>
    %c0_2 = arith.constant 0 : index
    %c0_3 = arith.constant 0 : index
    %6 = vector.load %arg5[%c0_2, %c0_3] : memref<6x512xbf16, #tpu.memory_space<vmem>>, vector<6x256xbf16>
    %c0_4 = arith.constant 0 : index
    %c0_5 = arith.constant 0 : index
    %7 = vector.load %arg6[%c0_4, %c0_5] : memref<1x512xf32, #tpu.memory_space<vmem>>, vector<1x256xf32>
    %c0_6 = arith.constant 0 : index
    %c0_7 = arith.constant 0 : index
    %8 = vector.load %arg9[%c0_6, %c0_7] : memref<1x512xf32, #tpu.memory_space<vmem>>, vector<1x256xf32>
    %c0_8 = arith.constant 0 : index
    %c0_9 = arith.constant 0 : index
    %9 = vector.load %arg10[%c0_8, %c0_9] : memref<2x256xf32, #tpu.memory_space<vmem>>, vector<1x256xf32>
    %cst = arith.constant dense<0.000000e+00> : vector<256x256xf32>
    %10 = tpu.matmul %5, %6, %cst {dimension_numbers = #tpu.dot_dimension_numbers<[1], [0], [0], [1], [0, 0, 1, 1], [], []>} : vector<256x6xbf16>, vector<6x256xbf16>, vector<256x256xf32> -> vector<256x256xf32>
    %11 = vector.broadcast %7 : vector<1x256xf32> to vector<256x256xf32>
    %12 = arith.addf %10, %11 : vector<256x256xf32>
    %cst_10 = arith.constant 0.000000e+00 : f32
    %13 = vector.broadcast %cst_10 : f32 to vector<256x256xf32>
    %14 = arith.maximumf %12, %13 : vector<256x256xf32>
    %15 = arith.truncf %14 : vector<256x256xf32> to vector<256x256xbf16>
    %c0_11 = arith.constant 0 : index
    %c0_12 = arith.constant 0 : index
    %16 = vector.load %arg7[%c0_11, %c0_12] : memref<256x256xbf16, #tpu.memory_space<vmem>>, vector<256x256xbf16>
    %cst_13 = arith.constant dense<0.000000e+00> : vector<256x256xf32>
    %17 = tpu.matmul %15, %16, %cst_13 {dimension_numbers = #tpu.dot_dimension_numbers<[1], [0], [0], [1], [0, 0, 1, 1], [], []>} : vector<256x256xbf16>, vector<256x256xbf16>, vector<256x256xf32> -> vector<256x256xf32>
    %18 = vector.broadcast %8 : vector<1x256xf32> to vector<256x256xf32>
    %19 = arith.addf %17, %18 : vector<256x256xf32>
    %cst_14 = arith.constant 0.000000e+00 : f32
    %20 = vector.broadcast %cst_14 : f32 to vector<256x256xf32>
    %21 = arith.maximumf %19, %20 : vector<256x256xf32>
    %22 = vector.broadcast %9 : vector<1x256xf32> to vector<256x256xf32>
    %23 = arith.mulf %21, %22 : vector<256x256xf32>
    %cst_15 = arith.constant dense<0.000000e+00> : vector<256xf32>
    %24 = vector.multi_reduction <add>, %23, %cst_15 [1] : vector<256x256xf32> to vector<256xf32>
    %25 = vector.shape_cast %24 : vector<256xf32> to vector<256x1xf32>
    %26 = vector.broadcast %3 : f32 to vector<256x1xf32>
    %27 = arith.addf %25, %26 : vector<256x1xf32>
    %c0_16 = arith.constant 0 : index
    %c256 = arith.constant 256 : index
    %28 = vector.load %arg5[%c0_16, %c256] : memref<6x512xbf16, #tpu.memory_space<vmem>>, vector<6x256xbf16>
    %c0_17 = arith.constant 0 : index
    %c256_18 = arith.constant 256 : index
    %29 = vector.load %arg6[%c0_17, %c256_18] : memref<1x512xf32, #tpu.memory_space<vmem>>, vector<1x256xf32>
    %c0_19 = arith.constant 0 : index
    %c256_20 = arith.constant 256 : index
    %30 = vector.load %arg9[%c0_19, %c256_20] : memref<1x512xf32, #tpu.memory_space<vmem>>, vector<1x256xf32>
    %c1_21 = arith.constant 1 : index
    %c0_22 = arith.constant 0 : index
    %31 = vector.load %arg10[%c1_21, %c0_22] : memref<2x256xf32, #tpu.memory_space<vmem>>, vector<1x256xf32>
    %cst_23 = arith.constant dense<0.000000e+00> : vector<256x256xf32>
    %32 = tpu.matmul %5, %28, %cst_23 {dimension_numbers = #tpu.dot_dimension_numbers<[1], [0], [0], [1], [0, 0, 1, 1], [], []>} : vector<256x6xbf16>, vector<6x256xbf16>, vector<256x256xf32> -> vector<256x256xf32>
    %33 = vector.broadcast %29 : vector<1x256xf32> to vector<256x256xf32>
    %34 = arith.addf %32, %33 : vector<256x256xf32>
    %cst_24 = arith.constant 0.000000e+00 : f32
    %35 = vector.broadcast %cst_24 : f32 to vector<256x256xf32>
    %36 = arith.maximumf %34, %35 : vector<256x256xf32>
    %37 = arith.truncf %36 : vector<256x256xf32> to vector<256x256xbf16>
    %c0_25 = arith.constant 0 : index
    %c0_26 = arith.constant 0 : index
    %38 = vector.load %arg8[%c0_25, %c0_26] : memref<256x256xbf16, #tpu.memory_space<vmem>>, vector<256x256xbf16>
    %cst_27 = arith.constant dense<0.000000e+00> : vector<256x256xf32>
    %39 = tpu.matmul %37, %38, %cst_27 {dimension_numbers = #tpu.dot_dimension_numbers<[1], [0], [0], [1], [0, 0, 1, 1], [], []>} : vector<256x256xbf16>, vector<256x256xbf16>, vector<256x256xf32> -> vector<256x256xf32>
    %40 = vector.broadcast %30 : vector<1x256xf32> to vector<256x256xf32>
    %41 = arith.addf %39, %40 : vector<256x256xf32>
    %cst_28 = arith.constant 0.000000e+00 : f32
    %42 = vector.broadcast %cst_28 : f32 to vector<256x256xf32>
    %43 = arith.maximumf %41, %42 : vector<256x256xf32>
    %44 = vector.broadcast %31 : vector<1x256xf32> to vector<256x256xf32>
    %45 = arith.mulf %43, %44 : vector<256x256xf32>
    %cst_29 = arith.constant dense<0.000000e+00> : vector<256xf32>
    %46 = vector.multi_reduction <add>, %45, %cst_29 [1] : vector<256x256xf32> to vector<256xf32>
    %47 = vector.shape_cast %46 : vector<256xf32> to vector<256x1xf32>
    %48 = vector.broadcast %4 : f32 to vector<256x1xf32>
    %49 = arith.addf %47, %48 : vector<256x1xf32>
    %cst_30 = arith.constant 1.000000e+00 : f32
    %50 = arith.subf %0, %cst_30 : f32
    %cst_31 = arith.constant 1.000000e-01 : f32
    %51 = arith.maximumf %50, %cst_31 : f32
    %52 = arith.divf %0, %51 : f32
    %c0_32 = arith.constant 0 : index
    %c0_33 = arith.constant 0 : index
    %53 = vector.load %arg2[%c0_32, %c0_33] : memref<256x1xf32, #tpu.memory_space<vmem>>, vector<256x1xf32>
    %54 = vector.broadcast %1 : f32 to vector<256x1xf32>
    %55 = arith.mulf %54, %53 : vector<256x1xf32>
    %56 = vector.broadcast %52 : f32 to vector<256x1xf32>
    %57 = arith.mulf %56, %55 : vector<256x1xf32>
    %58 = arith.addf %57, %27 : vector<256x1xf32>
    %cst_34 = arith.constant 0.000000e+00 : f32
    %59 = vector.broadcast %cst_34 : f32 to vector<256x1xf32>
    %60 = arith.maximumf %58, %59 : vector<256x1xf32>
    %c0_35 = arith.constant 0 : index
    %c0_36 = arith.constant 0 : index
    %61 = vector.load %arg3[%c0_35, %c0_36] : memref<256x1xf32, #tpu.memory_space<vmem>>, vector<256x1xf32>
    %62 = arith.divf %60, %61 : vector<256x1xf32>
    %63 = vector.broadcast %2 : f32 to vector<256x1xf32>
    %64 = arith.mulf %62, %63 : vector<256x1xf32>
    %65 = arith.addf %64, %49 : vector<256x1xf32>
    %c0_37 = arith.constant 0 : index
    %c0_38 = arith.constant 0 : index
    %66 = vector.load %arg11[%c0_37, %c0_38] : memref<256x1xf32, #tpu.memory_space<vmem>>, vector<256x1xf32>
    tpu.vector_store %arg11[%c0_37, %c0_38], %65 {strides = array<i32>} : memref<256x1xf32, #tpu.memory_space<vmem>>, vector<256x1xf32>,
    return
  }
  func.func @transform_0(%arg0: i32) -> i32 {
    %c0_i32 = arith.constant 0 : i32
    %c0_i32_0 = arith.constant 0 : i32
    return %c0_i32 : i32
  }
  func.func @transform_1(%arg0: i32) -> (i32, i32) {
    %c0_i32 = arith.constant 0 : i32
    %c0_i32_0 = arith.constant 0 : i32
    return %arg0, %c0_i32 : i32, i32
  }
  func.func @transform_2(%arg0: i32) -> (i32, i32) {
    %c0_i32 = arith.constant 0 : i32
    %c0_i32_0 = arith.constant 0 : i32
    return %arg0, %c0_i32 : i32, i32
  }
  func.func @transform_3(%arg0: i32) -> (i32, i32) {
    %c0_i32 = arith.constant 0 : i32
    %c0_i32_0 = arith.constant 0 : i32
    return %arg0, %c0_i32 : i32, i32
  }
  func.func @transform_4(%arg0: i32) -> (i32, i32) {
    %c0_i32 = arith.constant 0 : i32
    %c0_i32_0 = arith.constant 0 : i32
    %c0_i32_1 = arith.constant 0 : i32
    return %c0_i32, %c0_i32_0 : i32, i32
  }
  func.func @transform_5(%arg0: i32) -> (i32, i32) {
    %c0_i32 = arith.constant 0 : i32
    %c0_i32_0 = arith.constant 0 : i32
    %c0_i32_1 = arith.constant 0 : i32
    return %c0_i32, %c0_i32_0 : i32, i32
  }
  func.func @transform_6(%arg0: i32) -> (i32, i32) {
    %c0_i32 = arith.constant 0 : i32
    %c0_i32_0 = arith.constant 0 : i32
    %c0_i32_1 = arith.constant 0 : i32
    return %c0_i32, %c0_i32_0 : i32, i32
  }
  func.func @transform_7(%arg0: i32) -> (i32, i32) {
    %c0_i32 = arith.constant 0 : i32
    %c0_i32_0 = arith.constant 0 : i32
    %c0_i32_1 = arith.constant 0 : i32
    return %c0_i32, %c0_i32_0 : i32, i32
  }
  func.func @transform_8(%arg0: i32) -> (i32, i32) {
    %c0_i32 = arith.constant 0 : i32
    %c0_i32_0 = arith.constant 0 : i32
    %c0_i32_1 = arith.constant 0 : i32
    return %c0_i32, %c0_i32_0 : i32, i32
  }
  func.func @transform_9(%arg0: i32) -> (i32, i32) {
    %c0_i32 = arith.constant 0 : i32
    %c0_i32_0 = arith.constant 0 : i32
    %c0_i32_1 = arith.constant 0 : i32
    return %c0_i32, %c0_i32_0 : i32, i32
  }
  func.func @transform_10(%arg0: i32) -> (i32, i32) {
    %c0_i32 = arith.constant 0 : i32
    %c0_i32_0 = arith.constant 0 : i32
    return %arg0, %c0_i32 : i32, i32
  }
}

</mosaic_0001>

<llo_original>
// kernel: tpu_custom_call.1
$region0: #{tpu_custom_call.1}
  #allocation0 [shape = 'u32[]', space=smem, size = 0x4, offset = 0x4, fixed_abs, tag = 'smem constant byte address 0x4 - core index']
  #allocation1 [shape = 'u32[144,128]{1,0:T(1,128)}', space=vmem, size = 0x12000, scoped, tag = 'internal scratch']
  %s0 = inlined_call_operand.hbm [shape: f32[5], index: 0, kind: input, shape index: {}]
  %s1 = inlined_call_operand.hbm [shape: f32[256,1], index: 1, kind: input, shape index: {}]
  %s2 = inlined_call_operand.hbm [shape: f32[256,1], index: 2, kind: input, shape index: {}]
  %s3 = inlined_call_operand.hbm [shape: bf16[256,6], index: 3, kind: input, shape index: {}]
  %s4 = inlined_call_operand.hbm [shape: bf16[6,512], index: 4, kind: input, shape index: {}]
  %s5 = inlined_call_operand.hbm [shape: f32[1,512], index: 5, kind: input, shape index: {}]
  %s6 = inlined_call_operand.hbm [shape: bf16[256,256], index: 6, kind: input, shape index: {}]
  %s7 = inlined_call_operand.hbm [shape: bf16[256,256], index: 7, kind: input, shape index: {}]
  %s8 = inlined_call_operand.hbm [shape: f32[1,512], index: 8, kind: input, shape index: {}]
  %s9 = inlined_call_operand.hbm [shape: f32[2,256], index: 9, kind: input, shape index: {}]
  %s10 = inlined_call_operand.hbm [shape: f32[256,1], index: 10, kind: output, shape index: {}]
  %s11 = sld [smem:[#allocation0]]
  $region90: #{tpu_custom_call.1} parent=0
    _
  %s13 = ssub.s32 1, %s11
  %s14 = scalar_select 0, %s13, %s11
  $region1: #{tpu_custom_call.1} parent=0
    #allocation2 [shape = 'u8[512]{0}', space=smem, size = 0x200, scoped, tag = 'input window, operand 0, single buffered']
    #allocation3 [shape = 's32[1]{0}', space=sflag, size = 0x4, scoped, tag = 'scoped memory for tpu_custom_call.1']
    #allocation4 [shape = 's32[1]{0}', space=sflag, size = 0x4, scoped, tag = 'scoped memory for tpu_custom_call.1']
    #allocation5 [shape = 's32[1]{0}', space=sflag, size = 0x4, scoped, tag = 'scoped memory for tpu_custom_call.1']
    #allocation6 [shape = 'u8[131072]{0}', space=vmem, size = 0x20000, scoped, tag = 'input window, operand 1, single buffered']
    #allocation7 [shape = 'u8[131072]{0}', space=vmem, size = 0x20000, scoped, tag = 'input window, operand 2, single buffered']
    #allocation8 [shape = 's32[1]{0}', space=sflag, size = 0x4, scoped, tag = 'scoped memory for tpu_custom_call.1']
    #allocation9 [shape = 'u8[65536]{0}', space=vmem, size = 0x10000, scoped, tag = 'input window, operand 3, single buffered']
    #allocation10 [shape = 'u8[8192]{0}', space=vmem, size = 0x2000, scoped, tag = 'input window, operand 4, single buffered']
    #allocation11 [shape = 's32[1]{0}', space=sflag, size = 0x4, scoped, tag = 'scoped memory for tpu_custom_call.1']
    #allocation12 [shape = 'u8[2048]{0}', space=vmem, size = 0x800, scoped, tag = 'input window, operand 5, single buffered']
    #allocation13 [shape = 'u8[131072]{0}', space=vmem, size = 0x20000, scoped, tag = 'input window, operand 6, single buffered']
    #allocation14 [shape = 's32[1]{0}', space=sflag, size = 0x4, scoped, tag = 'scoped memory for tpu_custom_call.1']
    #allocation15 [shape = 'u8[131072]{0}', space=vmem, size = 0x20000, scoped, tag = 'input window, operand 7, single buffered']
    #allocation16 [shape = 'u8[2048]{0}', space=vmem, size = 0x800, scoped, tag = 'input window, operand 8, single buffered']
    #allocation17 [shape = 's32[1]{0}', space=sflag, size = 0x4, scoped, tag = 'scoped memory for tpu_custom_call.1']
    #allocation18 [shape = 'u8[2048]{0}', space=vmem, size = 0x800, scoped, tag = 'input window, operand 9, single buffered']
    #allocation19 [shape = 'u8[131072]{0}', space=vmem, size = 0x20000, scoped, tag = 'output window, operand 0, single buffered']
    %15 = vsyncpa [#allocation5], 0
    %16 = vsyncpa [#allocation3], 0
    %17 = vsyncpa [#allocation8], 0
    %18 = vsyncpa [#allocation11], 0
    %19 = vsyncpa [#allocation14], 0
    %20 = vsyncpa [#allocation17], 0
    %21 = vsyncpa [#allocation4], 0
    // Predicated region
    $region2: #{tpu_custom_call.1} parent=1 // pred_check
      _
    $region3: #{tpu_custom_call.1} parent=1 // pred_check_branch
      %23 = sbr.rel (0) target = $region5
    $region4: #{tpu_custom_call.1} parent=1 // pred_region
      %s25 = ssub.s32 16, 16
      %26 = vsyncadd [#allocation5], %s25
      %29 = dma.hbm_to_smem %s0, 16, [#allocation2], [#allocation5]
    $region5: #{tpu_custom_call.1} parent=1 // pred_fallthru
      _
    // Predicated region
    $region6: #{tpu_custom_call.1} parent=1 // pred_check
      _
    $region7: #{tpu_custom_call.1} parent=1 // pred_check_branch
      %31 = sbr.rel (0) target = $region9
    $region8: #{tpu_custom_call.1} parent=1 // pred_region
      %s33 = ssub.s32 4096, 4096
      %34 = vsyncadd [#allocation3], %s33
      %s35 = sshll.u32 [#allocation6], 4
      %s36 = int_to_ptr.vmem [resolvable:$true] %s35
      %41 = dma.hbm_to_vmem [thread:$0]  %s1, 4096, %s36, [#allocation3], 128, 128, 8
    $region9: #{tpu_custom_call.1} parent=1 // pred_fallthru
      _
    // Predicated region
    $region10: #{tpu_custom_call.1} parent=1 // pred_check
      _
    $region11: #{tpu_custom_call.1} parent=1 // pred_check_branch
      %43 = sbr.rel (0) target = $region13
    $region12: #{tpu_custom_call.1} parent=1 // pred_region
      %s45 = ssub.s32 4096, 4096
      %46 = vsyncadd [#allocation8], %s45
      %s47 = sshll.u32 [#allocation7], 4
      %s48 = int_to_ptr.vmem [resolvable:$true] %s47
      %53 = dma.hbm_to_vmem [thread:$0]  %s2, 4096, %s48, [#allocation8], 128, 128, 8
    $region13: #{tpu_custom_call.1} parent=1 // pred_fallthru
      _
    // Predicated region
    $region14: #{tpu_custom_call.1} parent=1 // pred_check
      _
    $region15: #{tpu_custom_call.1} parent=1 // pred_check_branch
      %55 = sbr.rel (0) target = $region17
    $region16: #{tpu_custom_call.1} parent=1 // pred_region
      %s57 = ssub.s32 2048, 2048
      %58 = vsyncadd [#allocation8], %s57
      %s59 = sshll.u32 [#allocation9], 4
      %s60 = int_to_ptr.vmem [resolvable:$true] %s59
      %65 = dma.hbm_to_vmem [thread:$0]  %s3, 2048, %s60, [#allocation8], 64, 64, 4
    $region17: #{tpu_custom_call.1} parent=1 // pred_fallthru
      _
    // Predicated region
    $region18: #{tpu_custom_call.1} parent=1 // pred_check
      _
    $region19: #{tpu_custom_call.1} parent=1 // pred_check_branch
      %67 = sbr.rel (0) target = $region21
    $region20: #{tpu_custom_call.1} parent=1 // pred_region
      %s69 = ssub.s32 256, 256
      %70 = vsyncadd [#allocation11], %s69
      %s72 = sshll.u32 [#allocation10], 4
      %s73 = int_to_ptr.vmem [resolvable:$true] %s72
      %75 = dma.hbm_to_vmem [thread:$0]  %s4, 256, %s73, [#allocation11]
    $region21: #{tpu_custom_call.1} parent=1 // pred_fallthru
      _
    // Predicated region
    $region22: #{tpu_custom_call.1} parent=1 // pred_check
      _
    $region23: #{tpu_custom_call.1} parent=1 // pred_check_branch
      %77 = sbr.rel (0) target = $region25
    $region24: #{tpu_custom_call.1} parent=1 // pred_region
      %s79 = ssub.s32 64, 64
      %80 = vsyncadd [#allocation11], %s79
      %s82 = sshll.u32 [#allocation12], 4
      %s83 = int_to_ptr.vmem [resolvable:$true] %s82
      %85 = dma.hbm_to_vmem [thread:$0]  %s5, 64, %s83, [#allocation11]
    $region25: #{tpu_custom_call.1} parent=1 // pred_fallthru
      _
    // Predicated region
    $region26: #{tpu_custom_call.1} parent=1 // pred_check
      _
    $region27: #{tpu_custom_call.1} parent=1 // pred_check_branch
      %87 = sbr.rel (0) target = $region29
    $region28: #{tpu_custom_call.1} parent=1 // pred_region
      %s89 = ssub.s32 4096, 4096
      %90 = vsyncadd [#allocation14], %s89
      %s91 = sshll.u32 [#allocation13], 4
      %s92 = int_to_ptr.vmem [resolvable:$true] %s91
      %97 = dma.hbm_to_vmem [thread:$0]  %s6, 4096, %s92, [#allocation14], 128, 128, 8
    $region29: #{tpu_custom_call.1} parent=1 // pred_fallthru
      _
    // Predicated region
    $region30: #{tpu_custom_call.1} parent=1 // pred_check
      _
    $region31: #{tpu_custom_call.1} parent=1 // pred_check_branch
      %99 = sbr.rel (0) target = $region33
    $region32: #{tpu_custom_call.1} parent=1 // pred_region
      %s101 = ssub.s32 4096, 4096
      %102 = vsyncadd [#allocation14], %s101
      %s103 = sshll.u32 [#allocation15], 4
      %s104 = int_to_ptr.vmem [resolvable:$true] %s103
      %109 = dma.hbm_to_vmem [thread:$0]  %s7, 4096, %s104, [#allocation14], 128, 128, 8
    $region33: #{tpu_custom_call.1} parent=1 // pred_fallthru
      _
    // Predicated region
    $region34: #{tpu_custom_call.1} parent=1 // pred_check
      _
    $region35: #{tpu_custom_call.1} parent=1 // pred_check_branch
      %111 = sbr.rel (0) target = $region37
    $region36: #{tpu_custom_call.1} parent=1 // pred_region
      %s113 = ssub.s32 64, 64
      %114 = vsyncadd [#allocation17], %s113
      %s116 = sshll.u32 [#allocation16], 4
      %s117 = int_to_ptr.vmem [resolvable:$true] %s116
      %119 = dma.hbm_to_vmem [thread:$0]  %s8, 64, %s117, [#allocation17]
    $region37: #{tpu_custom_call.1} parent=1 // pred_fallthru
      _
    // Predicated region
    $region38: #{tpu_custom_call.1} parent=1 // pred_check
      _
    $region39: #{tpu_custom_call.1} parent=1 // pred_check_branch
      %121 = sbr.rel (0) target = $region41
    $region40: #{tpu_custom_call.1} parent=1 // pred_region
      %s123 = ssub.s32 64, 64
      %124 = vsyncadd [#allocation17], %s123
      %s126 = sshll.u32 [#allocation18], 4
      %s127 = int_to_ptr.vmem [resolvable:$true] %s126
      %129 = dma.hbm_to_vmem [thread:$0]  %s9, 64, %s127, [#allocation17]
    $region41: #{tpu_custom_call.1} parent=1 // pred_fallthru
      _
    // Predicated region
    $region42: #{tpu_custom_call.1} parent=1 // pred_check
      _
    $region43: #{tpu_custom_call.1} parent=1 // pred_check_branch
      %131 = sbr.rel (0) target = $region45
    $region44: #{tpu_custom_call.1} parent=1 // pred_region
      %132 = dma.done [#allocation5], 16
    $region45: #{tpu_custom_call.1} parent=1 // pred_fallthru
      _
    // Predicated region
    $region46: #{tpu_custom_call.1} parent=1 // pred_check
      _
    $region47: #{tpu_custom_call.1} parent=1 // pred_check_branch
      %134 = sbr.rel (0) target = $region49
    $region48: #{tpu_custom_call.1} parent=1 // pred_region
      %135 = dma.done [#allocation3], 4096
    $region49: #{tpu_custom_call.1} parent=1 // pred_fallthru
      _
    // Predicated region
    $region50: #{tpu_custom_call.1} parent=1 // pred_check
      _
    $region51: #{tpu_custom_call.1} parent=1 // pred_check_branch
      %137 = sbr.rel (0) target = $region53
    $region52: #{tpu_custom_call.1} parent=1 // pred_region
      %138 = dma.done [#allocation8], 4096
    $region53: #{tpu_custom_call.1} parent=1 // pred_fallthru
      _
    // Predicated region
    $region54: #{tpu_custom_call.1} parent=1 // pred_check
      _
    $region55: #{tpu_custom_call.1} parent=1 // pred_check_branch
      %140 = sbr.rel (0) target = $region57
    $region56: #{tpu_custom_call.1} parent=1 // pred_region
      %141 = dma.done [#allocation8], 2048
    $region57: #{tpu_custom_call.1} parent=1 // pred_fallthru
      _
    // Predicated region
    $region58: #{tpu_custom_call.1} parent=1 // pred_check
      _
    $region59: #{tpu_custom_call.1} parent=1 // pred_check_branch
      %143 = sbr.rel (0) target = $region61
    $region60: #{tpu_custom_call.1} parent=1 // pred_region
      %144 = dma.done [#allocation11], 256
    $region61: #{tpu_custom_call.1} parent=1 // pred_fallthru
      _
    // Predicated region
    $region62: #{tpu_custom_call.1} parent=1 // pred_check
      _
    $region63: #{tpu_custom_call.1} parent=1 // pred_check_branch
      %146 = sbr.rel (0) target = $region65
    $region64: #{tpu_custom_call.1} parent=1 // pred_region
      %147 = dma.done [#allocation11], 64
    $region65: #{tpu_custom_call.1} parent=1 // pred_fallthru
      _
    // Predicated region
    $region66: #{tpu_custom_call.1} parent=1 // pred_check
      _
    $region67: #{tpu_custom_call.1} parent=1 // pred_check_branch
      %149 = sbr.rel (0) target = $region69
    $region68: #{tpu_custom_call.1} parent=1 // pred_region
      %150 = dma.done [#allocation14], 4096
    $region69: #{tpu_custom_call.1} parent=1 // pred_fallthru
      _
    // Predicated region
    $region70: #{tpu_custom_call.1} parent=1 // pred_check
      _
    $region71: #{tpu_custom_call.1} parent=1 // pred_check_branch
      %152 = sbr.rel (0) target = $region73
    $region72: #{tpu_custom_call.1} parent=1 // pred_region
      %153 = dma.done [#allocation14], 4096
    $region73: #{tpu_custom_call.1} parent=1 // pred_fallthru
      _
    // Predicated region
    $region74: #{tpu_custom_call.1} parent=1 // pred_check
      _
    $region75: #{tpu_custom_call.1} parent=1 // pred_check_branch
      %155 = sbr.rel (0) target = $region77
    $region76: #{tpu_custom_call.1} parent=1 // pred_region
      %156 = dma.done [#allocation17], 64
    $region77: #{tpu_custom_call.1} parent=1 // pred_fallthru
      _
    // Predicated region
    $region78: #{tpu_custom_call.1} parent=1 // pred_check
      _
    $region79: #{tpu_custom_call.1} parent=1 // pred_check_branch
      %158 = sbr.rel (0) target = $region81
    $region80: #{tpu_custom_call.1} parent=1 // pred_region
      %159 = dma.done [#allocation17], 64
    $region81: #{tpu_custom_call.1} parent=1 // pred_fallthru
      _
    %160 = sfence
    %s162 = sld [smem:[#allocation2]]
    %s163 = sld [smem:[#allocation2 + $0x1]]
    %s164 = sld [smem:[#allocation2 + $0x2]]
    %s165 = sld [smem:[#allocation2 + $0x3]]
    %s166 = sld [smem:[#allocation2 + $0x4]]
    %v167 = vld [vmem:[#allocation9] sm:$0xf]
    %v168 = vld [vmem:[#allocation9 + $0x4] sm:$0xf]
    %v169 = vld [vmem:[#allocation9 + $0x8] sm:$0xf]
    %v170 = vld [vmem:[#allocation9 + $0xc] sm:$0xf]
    %v171 = vld [vmem:[#allocation9 + $0x10] sm:$0xf]
    %v172 = vld [vmem:[#allocation9 + $0x14] sm:$0xf]
    %v173 = vld [vmem:[#allocation9 + $0x18] sm:$0xf]
    %v174 = vld [vmem:[#allocation9 + $0x1c] sm:$0xf]
    %v175 = vld [vmem:[#allocation9 + $0x20] sm:$0xf]
    %v176 = vld [vmem:[#allocation9 + $0x24] sm:$0xf]
    %v177 = vld [vmem:[#allocation9 + $0x28] sm:$0xf]
    %v178 = vld [vmem:[#allocation9 + $0x2c] sm:$0xf]
    %v179 = vld [vmem:[#allocation9 + $0x30] sm:$0xf]
    %v180 = vld [vmem:[#allocation9 + $0x34] sm:$0xf]
    %v181 = vld [vmem:[#allocation9 + $0x38] sm:$0xf]
    %v182 = vld [vmem:[#allocation9 + $0x3c] sm:$0xf]
    %v183 = vld [vmem:[#allocation9 + $0x40] sm:$0xf]
    %v184 = vld [vmem:[#allocation9 + $0x44] sm:$0xf]
    %v185 = vld [vmem:[#allocation9 + $0x48] sm:$0xf]
    %v186 = vld [vmem:[#allocation9 + $0x4c] sm:$0xf]
    %v187 = vld [vmem:[#allocation9 + $0x50] sm:$0xf]
    %v188 = vld [vmem:[#allocation9 + $0x54] sm:$0xf]
    %v189 = vld [vmem:[#allocation9 + $0x58] sm:$0xf]
    %v190 = vld [vmem:[#allocation9 + $0x5c] sm:$0xf]
    %v191 = vld [vmem:[#allocation9 + $0x60] sm:$0xf]
    %v192 = vld [vmem:[#allocation9 + $0x64] sm:$0xf]
    %v193 = vld [vmem:[#allocation9 + $0x68] sm:$0xf]
    %v194 = vld [vmem:[#allocation9 + $0x6c] sm:$0xf]
    %v195 = vld [vmem:[#allocation9 + $0x70] sm:$0xf]
    %v196 = vld [vmem:[#allocation9 + $0x74] sm:$0xf]
    %v197 = vld [vmem:[#allocation9 + $0x78] sm:$0xf]
    %v198 = vld [vmem:[#allocation9 + $0x7c] sm:$0xf]
    %v199 = vld [vmem:[#allocation10] sm:$0x77]
    %v200 = vld [vmem:[#allocation12] sm:$0x3]
    %v201 = vld [vmem:[#allocation16] sm:$0x3]
    %v202 = vld [vmem:[#allocation18] ss:$2 sm:$0x3]
    %v204 = vlaneseq
    %v205 = vshrl.u32 %v204, 7
    %v206 = vsub.s32 0, %v205
    %v207 = vrot.slane %v200, %v206
    %v208 = vlaneseq
    %v209 = vshrl.u32 %v208, 7
    %v210 = vsub.s32 1, %v209
    %v211 = vrot.slane %v200, %v210
    %v246 = vunpack.c.l.b16 %v167
    %v247 = vunpack.c.l.b16 %v168
    %v248 = vunpack.c.l.b16 %v169
    %v249 = vunpack.c.l.b16 %v170
    %v250 = vunpack.c.l.b16 %v171
    %v251 = vunpack.c.l.b16 %v172
    %v252 = vunpack.c.l.b16 %v173
    %v253 = vunpack.c.l.b16 %v174
    %v254 = vunpack.c.l.b16 %v175
    %v255 = vunpack.c.l.b16 %v176
    %v256 = vunpack.c.l.b16 %v177
    %v257 = vunpack.c.l.b16 %v178
    %v258 = vunpack.c.l.b16 %v179
    %v259 = vunpack.c.l.b16 %v180
    %v260 = vunpack.c.l.b16 %v181
    %v261 = vunpack.c.l.b16 %v182
    %v262 = vunpack.c.l.b16 %v183
    %v263 = vunpack.c.l.b16 %v184
    %v264 = vunpack.c.l.b16 %v185
    %v265 = vunpack.c.l.b16 %v186
    %v266 = vunpack.c.l.b16 %v187
    %v267 = vunpack.c.l.b16 %v188
    %v268 = vunpack.c.l.b16 %v189
    %v269 = vunpack.c.l.b16 %v190
    %v270 = vunpack.c.l.b16 %v191
    %v271 = vunpack.c.l.b16 %v192
    %v272 = vunpack.c.l.b16 %v193
    %v273 = vunpack.c.l.b16 %v194
    %v274 = vunpack.c.l.b16 %v195
    %v275 = vunpack.c.l.b16 %v196
    %v276 = vunpack.c.l.b16 %v197
    %v277 = vunpack.c.l.b16 %v198
    %v278 = vpack.c.b16 %v247, %v246
    %v279 = vpack.c.b16 %v249, %v248
    %v280 = vpack.c.b16 %v251, %v250
    %v281 = vpack.c.b16 %v253, %v252
    %v282 = vpack.c.b16 %v255, %v254
    %v283 = vpack.c.b16 %v257, %v256
    %v284 = vpack.c.b16 %v259, %v258
    %v285 = vpack.c.b16 %v261, %v260
    %v286 = vpack.c.b16 %v263, %v262
    %v287 = vpack.c.b16 %v265, %v264
    %v288 = vpack.c.b16 %v267, %v266
    %v289 = vpack.c.b16 %v269, %v268
    %v290 = vpack.c.b16 %v271, %v270
    %v291 = vpack.c.b16 %v273, %v272
    %v292 = vpack.c.b16 %v275, %v274
    %v293 = vpack.c.b16 %v277, %v276
    %v295 = vunpack.c.l.b16 %v199
    %v296 = vunpack.c.h.b16 %v199
    %v297 = vpack.c.b16 %v295, %v295
    %v298 = vpack.c.b16 %v296, %v296
    %vm299 = vcmask 48128
    %v301 = vsel %vm299, %v278, 0
    %v304 = vsel %vm299, %v279, 0
    %v307 = vsel %vm299, %v280, 0
    %v310 = vsel %vm299, %v281, 0
    %v313 = vsel %vm299, %v282, 0
    %v316 = vsel %vm299, %v283, 0
    %v319 = vsel %vm299, %v284, 0
    %v322 = vsel %vm299, %v285, 0
    %v325 = vsel %vm299, %v286, 0
    %v328 = vsel %vm299, %v287, 0
    %v331 = vsel %vm299, %v288, 0
    %v334 = vsel %vm299, %v289, 0
    %v337 = vsel %vm299, %v290, 0
    %v340 = vsel %vm299, %v291, 0
    %v343 = vsel %vm299, %v292, 0
    %v346 = vsel %vm299, %v293, 0
    %vm348 = vcmask 1042432
    %v350 = vsel %vm348, %v297, 0
    %v353 = vsel %vm348, %v298, 0
    %355 = vmatprep.subr.bf16.mxu0 %v353
    %356 = vmatpush1.bf16.msra.mxu0 %v350
    %357 = vmatprep.subr.bf16.mxu0 0
    %358 = vmatpush1.bf16.msra.mxu0 0
    %359 = vmatprep.subr.bf16.mxu0 0
    %360 = vmatpush1.bf16.msra.mxu0 0
    %361 = vmatprep.subr.bf16.mxu0 0
    %362 = vmatpush1.bf16.msra.mxu0 0
    %363 = vmatprep.subr.bf16.mxu0 0
    %364 = vmatpush1.bf16.msra.mxu0 0
    %365 = vmatprep.subr.bf16.mxu0 0
    %366 = vmatpush1.bf16.msra.mxu0 0
    %367 = vmatprep.subr.bf16.mxu0 0
    %368 = vmatpush1.bf16.msra.mxu0 0
    %369 = vmatprep.subr.bf16.mxu0 0
    %370 = vmatpush1.bf16.msra.mxu0 0
    %371 = vmatprep.subr.bf16.mxu0 0
    %372 = vmatpush1.bf16.msra.mxu0 0
    %373 = vmatprep.subr.bf16.mxu0 0
    %374 = vmatpush1.bf16.msra.mxu0 0
    %375 = vmatprep.subr.bf16.mxu0 0
    %376 = vmatpush1.bf16.msra.mxu0 0
    %377 = vmatprep.subr.bf16.mxu0 0
    %378 = vmatpush1.bf16.msra.mxu0 0
    %379 = vmatprep.subr.bf16.mxu0 0
    %380 = vmatpush1.bf16.msra.mxu0 0
    %381 = vmatprep.subr.bf16.mxu0 0
    %382 = vmatpush1.bf16.msra.mxu0 0
    %383 = vmatprep.subr.bf16.mxu0 0
    %384 = vmatpush1.bf16.msra.mxu0 0
    %385 = vmatprep.subr.bf16.mxu0 0
    %386 = vmatpush1.bf16.msra.mxu0 0
    %387 = vmatprep.mubr.bf16.mxu0 0
    %388 = vmatmul.mubr.bf16.gmra.mrb[0].mxu0 %v301
    %v389 = vpop.f32.mrb[0].mxu0
    %v390 = vadd.f32 %v207, %v389
    %v391 = vpop.f32.mrb[0].mxu0
    %v392 = vadd.f32 %v211, %v391
    %v393 = vpop.f32.mrb[0].mxu0
    %v394 = vadd.f32 %v207, %v393
    %v395 = vpop.f32.mrb[0].mxu0
    %v396 = vadd.f32 %v211, %v395
    %397 = vmatprep.mubr.bf16.mxu0 0
    %398 = vmatmul.mubr.bf16.gmra.mrb[0].mxu0 %v304
    %v399 = vpop.f32.mrb[0].mxu0
    %v400 = vadd.f32 %v207, %v399
    %v401 = vpop.f32.mrb[0].mxu0
    %v402 = vadd.f32 %v211, %v401
    %v403 = vpop.f32.mrb[0].mxu0
    %v404 = vadd.f32 %v207, %v403
    %v405 = vpop.f32.mrb[0].mxu0
    %v406 = vadd.f32 %v211, %v405
    %407 = vmatprep.mubr.bf16.mxu0 0
    %408 = vmatmul.mubr.bf16.gmra.mrb[0].mxu0 %v307
    %v409 = vpop.f32.mrb[0].mxu0
    %v410 = vadd.f32 %v207, %v409
    %v411 = vpop.f32.mrb[0].mxu0
    %v412 = vadd.f32 %v211, %v411
    %v413 = vpop.f32.mrb[0].mxu0
    %v414 = vadd.f32 %v207, %v413
    %v415 = vpop.f32.mrb[0].mxu0
    %v416 = vadd.f32 %v211, %v415
    %417 = vmatprep.mubr.bf16.mxu0 0
    %418 = vmatmul.mubr.bf16.gmra.mrb[0].mxu0 %v310
    %v419 = vpop.f32.mrb[0].mxu0
    %v420 = vadd.f32 %v207, %v419
    %v421 = vpop.f32.mrb[0].mxu0
    %v422 = vadd.f32 %v211, %v421
    %v423 = vpop.f32.mrb[0].mxu0
    %v424 = vadd.f32 %v207, %v423
    %v425 = vpop.f32.mrb[0].mxu0
    %v426 = vadd.f32 %v211, %v425
    %427 = vmatprep.mubr.bf16.mxu0 0
    %428 = vmatmul.mubr.bf16.gmra.mrb[0].mxu0 %v313
    %v429 = vpop.f32.mrb[0].mxu0
    %v430 = vadd.f32 %v207, %v429
    %v431 = vpop.f32.mrb[0].mxu0
    %v432 = vadd.f32 %v211, %v431
    %v433 = vpop.f32.mrb[0].mxu0
    %v434 = vadd.f32 %v207, %v433
    %v435 = vpop.f32.mrb[0].mxu0
    %v436 = vadd.f32 %v211, %v435
    %437 = vmatprep.mubr.bf16.mxu0 0
    %438 = vmatmul.mubr.bf16.gmra.mrb[0].mxu0 %v316
    %v439 = vpop.f32.mrb[0].mxu0
    %v440 = vadd.f32 %v207, %v439
    %v441 = vpop.f32.mrb[0].mxu0
    %v442 = vadd.f32 %v211, %v441
    %v443 = vpop.f32.mrb[0].mxu0
    %v444 = vadd.f32 %v207, %v443
    %v445 = vpop.f32.mrb[0].mxu0
    %v446 = vadd.f32 %v211, %v445
    %447 = vmatprep.mubr.bf16.mxu0 0
    %448 = vmatmul.mubr.bf16.gmra.mrb[0].mxu0 %v319
    %v449 = vpop.f32.mrb[0].mxu0
    %v450 = vadd.f32 %v207, %v449
    %v451 = vpop.f32.mrb[0].mxu0
    %v452 = vadd.f32 %v211, %v451
    %v453 = vpop.f32.mrb[0].mxu0
    %v454 = vadd.f32 %v207, %v453
    %v455 = vpop.f32.mrb[0].mxu0
    %v456 = vadd.f32 %v211, %v455
    %457 = vmatprep.mubr.bf16.mxu0 0
    %458 = vmatmul.mubr.bf16.gmra.mrb[0].mxu0 %v322
    %v459 = vpop.f32.mrb[0].mxu0
    %v460 = vadd.f32 %v207, %v459
    %v461 = vpop.f32.mrb[0].mxu0
    %v462 = vadd.f32 %v211, %v461
    %v463 = vpop.f32.mrb[0].mxu0
    %v464 = vadd.f32 %v207, %v463
    %v465 = vpop.f32.mrb[0].mxu0
    %v466 = vadd.f32 %v211, %v465
    %467 = vmatprep.mubr.bf16.mxu0 0
    %468 = vmatmul.mubr.bf16.gmra.mrb[0].mxu0 %v325
    %v469 = vpop.f32.mrb[0].mxu0
    %v470 = vadd.f32 %v207, %v469
    %v471 = vpop.f32.mrb[0].mxu0
    %v472 = vadd.f32 %v211, %v471
    %v473 = vpop.f32.mrb[0].mxu0
    %v474 = vadd.f32 %v207, %v473
    %v475 = vpop.f32.mrb[0].mxu0
    %v476 = vadd.f32 %v211, %v475
    %477 = vmatprep.mubr.bf16.mxu0 0
    %478 = vmatmul.mubr.bf16.gmra.mrb[0].mxu0 %v328
    %v479 = vpop.f32.mrb[0].mxu0
    %v480 = vadd.f32 %v207, %v479
    %v481 = vpop.f32.mrb[0].mxu0
    %v482 = vadd.f32 %v211, %v481
    %v483 = vpop.f32.mrb[0].mxu0
    %v484 = vadd.f32 %v207, %v483
    %v485 = vpop.f32.mrb[0].mxu0
    %v486 = vadd.f32 %v211, %v485
    %487 = vmatprep.mubr.bf16.mxu0 0
    %488 = vmatmul.mubr.bf16.gmra.mrb[0].mxu0 %v331
    %v489 = vpop.f32.mrb[0].mxu0
    %v490 = vadd.f32 %v207, %v489
    %v491 = vpop.f32.mrb[0].mxu0
    %v492 = vadd.f32 %v211, %v491
    %v493 = vpop.f32.mrb[0].mxu0
    %v494 = vadd.f32 %v207, %v493
    %v495 = vpop.f32.mrb[0].mxu0
    %v496 = vadd.f32 %v211, %v495
    %497 = vmatprep.mubr.bf16.mxu0 0
    %498 = vmatmul.mubr.bf16.gmra.mrb[0].mxu0 %v334
    %v499 = vpop.f32.mrb[0].mxu0
    %v500 = vadd.f32 %v207, %v499
    %v501 = vpop.f32.mrb[0].mxu0
    %v502 = vadd.f32 %v211, %v501
    %v503 = vpop.f32.mrb[0].mxu0
    %v504 = vadd.f32 %v207, %v503
    %v505 = vpop.f32.mrb[0].mxu0
    %v506 = vadd.f32 %v211, %v505
    %507 = vmatprep.mubr.bf16.mxu0 0
    %508 = vmatmul.mubr.bf16.gmra.mrb[0].mxu0 %v337
    %v509 = vpop.f32.mrb[0].mxu0
    %v510 = vadd.f32 %v207, %v509
    %v511 = vpop.f32.mrb[0].mxu0
    %v512 = vadd.f32 %v211, %v511
    %v513 = vpop.f32.mrb[0].mxu0
    %v514 = vadd.f32 %v207, %v513
    %v515 = vpop.f32.mrb[0].mxu0
    %v516 = vadd.f32 %v211, %v515
    %517 = vmatprep.mubr.bf16.mxu0 0
    %518 = vmatmul.mubr.bf16.gmra.mrb[0].mxu0 %v340
    %v519 = vpop.f32.mrb[0].mxu0
    %v520 = vadd.f32 %v207, %v519
    %v521 = vpop.f32.mrb[0].mxu0
    %v522 = vadd.f32 %v211, %v521
    %v523 = vpop.f32.mrb[0].mxu0
    %v524 = vadd.f32 %v207, %v523
    %v525 = vpop.f32.mrb[0].mxu0
    %v526 = vadd.f32 %v211, %v525
    %527 = vmatprep.mubr.bf16.mxu0 0
    %528 = vmatmul.mubr.bf16.gmra.mrb[0].mxu0 %v343
    %v529 = vpop.f32.mrb[0].mxu0
    %v530 = vadd.f32 %v207, %v529
    %v531 = vpop.f32.mrb[0].mxu0
    %v532 = vadd.f32 %v211, %v531
    %v533 = vpop.f32.mrb[0].mxu0
    %v534 = vadd.f32 %v207, %v533
    %v535 = vpop.f32.mrb[0].mxu0
    %v536 = vadd.f32 %v211, %v535
    %537 = vmatprep.mubr.bf16.mxu0 0
    %538 = vmatmul.mubr.bf16.gmra.mrb[0].mxu0 %v346
    %v539 = vpop.f32.mrb[0].mxu0
    %v540 = vadd.f32 %v207, %v539
    %v541 = vpop.f32.mrb[0].mxu0
    %v542 = vadd.f32 %v211, %v541
    %v543 = vpop.f32.mrb[0].mxu0
    %v544 = vadd.f32 %v207, %v543
    %v545 = vpop.f32.mrb[0].mxu0
    %v546 = vadd.f32 %v211, %v545
    %547 = vdwg.mxu0
    %v548 = vmax.f32 %v390, 0.0
    %v549 = vmax.f32 %v392, 0.0
    %v550 = vmax.f32 %v394, 0.0
    %v551 = vmax.f32 %v396, 0.0
    %v552 = vmax.f32 %v400, 0.0
    %v553 = vmax.f32 %v402, 0.0
    %v554 = vmax.f32 %v404, 0.0
    %v555 = vmax.f32 %v406, 0.0
    %v556 = vmax.f32 %v410, 0.0
    %v557 = vmax.f32 %v412, 0.0
    %v558 = vmax.f32 %v414, 0.0
    %v559 = vmax.f32 %v416, 0.0
    %v560 = vmax.f32 %v420, 0.0
    %v561 = vmax.f32 %v422, 0.0
    %v562 = vmax.f32 %v424, 0.0
    %v563 = vmax.f32 %v426, 0.0
    %v564 = vmax.f32 %v430, 0.0
    %v565 = vmax.f32 %v432, 0.0
    %v566 = vmax.f32 %v434, 0.0
    %v567 = vmax.f32 %v436, 0.0
    %v568 = vmax.f32 %v440, 0.0
    %v569 = vmax.f32 %v442, 0.0
    %v570 = vmax.f32 %v444, 0.0
    %v571 = vmax.f32 %v446, 0.0
    %v572 = vmax.f32 %v450, 0.0
    %v573 = vmax.f32 %v452, 0.0
    %v574 = vmax.f32 %v454, 0.0
    %v575 = vmax.f32 %v456, 0.0
    %v576 = vmax.f32 %v460, 0.0
    %v577 = vmax.f32 %v462, 0.0
    %v578 = vmax.f32 %v464, 0.0
    %v579 = vmax.f32 %v466, 0.0
    %v580 = vmax.f32 %v470, 0.0
    %v581 = vmax.f32 %v472, 0.0
    %v582 = vmax.f32 %v474, 0.0
    %v583 = vmax.f32 %v476, 0.0
    %v584 = vmax.f32 %v480, 0.0
    %v585 = vmax.f32 %v482, 0.0
    %v586 = vmax.f32 %v484, 0.0
    %v587 = vmax.f32 %v486, 0.0
    %v588 = vmax.f32 %v490, 0.0
    %v589 = vmax.f32 %v492, 0.0
    %v590 = vmax.f32 %v494, 0.0
    %v591 = vmax.f32 %v496, 0.0
    %v592 = vmax.f32 %v500, 0.0
    %v593 = vmax.f32 %v502, 0.0
    %v594 = vmax.f32 %v504, 0.0
    %v595 = vmax.f32 %v506, 0.0
    %v596 = vmax.f32 %v510, 0.0
    %v597 = vmax.f32 %v512, 0.0
    %v598 = vmax.f32 %v514, 0.0
    %v599 = vmax.f32 %v516, 0.0
    %v600 = vmax.f32 %v520, 0.0
    %v601 = vmax.f32 %v522, 0.0
    %v602 = vmax.f32 %v524, 0.0
    %v603 = vmax.f32 %v526, 0.0
    %v604 = vmax.f32 %v530, 0.0
    %v605 = vmax.f32 %v532, 0.0
    %v606 = vmax.f32 %v534, 0.0
    %v607 = vmax.f32 %v536, 0.0
    %v608 = vmax.f32 %v540, 0.0
    %v609 = vmax.f32 %v542, 0.0
    %v610 = vmax.f32 %v544, 0.0
    %v611 = vmax.f32 %v546, 0.0
    %v612 = vpack.c.bf16 %v550, %v548
    %v613 = vpack.c.bf16 %v551, %v549
    %v614 = vpack.c.bf16 %v554, %v552
    %v615 = vpack.c.bf16 %v555, %v553
    %v616 = vpack.c.bf16 %v558, %v556
    %v617 = vpack.c.bf16 %v559, %v557
    %v618 = vpack.c.bf16 %v562, %v560
    %v619 = vpack.c.bf16 %v563, %v561
    %v620 = vpack.c.bf16 %v566, %v564
    %v621 = vpack.c.bf16 %v567, %v565
    %v622 = vpack.c.bf16 %v570, %v568
    %v623 = vpack.c.bf16 %v571, %v569
    %v624 = vpack.c.bf16 %v574, %v572
    %v625 = vpack.c.bf16 %v575, %v573
    %v626 = vpack.c.bf16 %v578, %v576
    %v627 = vpack.c.bf16 %v579, %v577
    %v628 = vpack.c.bf16 %v582, %v580
    %v629 = vpack.c.bf16 %v583, %v581
    %v630 = vpack.c.bf16 %v586, %v584
    %v631 = vpack.c.bf16 %v587, %v585
    %v632 = vpack.c.bf16 %v590, %v588
    %v633 = vpack.c.bf16 %v591, %v589
    %v634 = vpack.c.bf16 %v594, %v592
    %v635 = vpack.c.bf16 %v595, %v593
    %v636 = vpack.c.bf16 %v598, %v596
    %v637 = vpack.c.bf16 %v599, %v597
    %v638 = vpack.c.bf16 %v602, %v600
    %v639 = vpack.c.bf16 %v603, %v601
    %v640 = vpack.c.bf16 %v606, %v604
    %v641 = vpack.c.bf16 %v607, %v605
    %v642 = vpack.c.bf16 %v610, %v608
    %v643 = vpack.c.bf16 %v611, %v609
    %v644 = vld [vmem:[#allocation13] sm:$0xff]
    %v645 = vld [vmem:[#allocation13 + $0x8] sm:$0xff]
    %v646 = vld [vmem:[#allocation13 + $0x10] sm:$0xff]
    %v647 = vld [vmem:[#allocation13 + $0x18] sm:$0xff]
    %v648 = vld [vmem:[#allocation13 + $0x20] sm:$0xff]
    %v649 = vld [vmem:[#allocation13 + $0x28] sm:$0xff]
    %v650 = vld [vmem:[#allocation13 + $0x30] sm:$0xff]
    %v651 = vld [vmem:[#allocation13 + $0x38] sm:$0xff]
    %v652 = vld [vmem:[#allocation13 + $0x40] sm:$0xff]
    %v653 = vld [vmem:[#allocation13 + $0x48] sm:$0xff]
    %v654 = vld [vmem:[#allocation13 + $0x50] sm:$0xff]
    %v655 = vld [vmem:[#allocation13 + $0x58] sm:$0xff]
    %v656 = vld [vmem:[#allocation13 + $0x60] sm:$0xff]
    %v657 = vld [vmem:[#allocation13 + $0x68] sm:$0xff]
    %v658 = vld [vmem:[#allocation13 + $0x70] sm:$0xff]
    %v659 = vld [vmem:[#allocation13 + $0x78] sm:$0xff]
    %v660 = vld [vmem:[#allocation13 + $0x80] sm:$0xff]
    %v661 = vld [vmem:[#allocation13 + $0x88] sm:$0xff]
    %v662 = vld [vmem:[#allocation13 + $0x90] sm:$0xff]
    %v663 = vld [vmem:[#allocation13 + $0x98] sm:$0xff]
    %v664 = vld [vmem:[#allocation13 + $0xa0] sm:$0xff]
    %v665 = vld [vmem:[#allocation13 + $0xa8] sm:$0xff]
    %v666 = vld [vmem:[#allocation13 + $0xb0] sm:$0xff]
    %v667 = vld [vmem:[#allocation13 + $0xb8] sm:$0xff]
    %v668 = vld [vmem:[#allocation13 + $0xc0] sm:$0xff]
    %v669 = vld [vmem:[#allocation13 + $0xc8] sm:$0xff]
    %v670 = vld [vmem:[#allocation13 + $0xd0] sm:$0xff]
    %v671 = vld [vmem:[#allocation13 + $0xd8] sm:$0xff]
    %v672 = vld [vmem:[#allocation13 + $0xe0] sm:$0xff]
    %v673 = vld [vmem:[#allocation13 + $0xe8] sm:$0xff]
    %v674 = vld [vmem:[#allocation13 + $0xf0] sm:$0xff]
    %v675 = vld [vmem:[#allocation13 + $0xf8] sm:$0xff]
    %v677 = vlaneseq
    %v678 = vshrl.u32 %v677, 7
    %v679 = vsub.s32 0, %v678
    %v680 = vrot.slane %v201, %v679
    %v681 = vlaneseq
    %v682 = vshrl.u32 %v681, 7
    %v683 = vsub.s32 1, %v682
    %v684 = vrot.slane %v201, %v683
    %v719 = vunpack.c.l.b16 %v644
    %v720 = vunpack.c.h.b16 %v644
    %v721 = vunpack.c.l.b16 %v645
    %v722 = vunpack.c.h.b16 %v645
    %v723 = vunpack.c.l.b16 %v646
    %v724 = vunpack.c.h.b16 %v646
    %v725 = vunpack.c.l.b16 %v647
    %v726 = vunpack.c.h.b16 %v647
    %v727 = vunpack.c.l.b16 %v648
    %v728 = vunpack.c.h.b16 %v648
    %v729 = vunpack.c.l.b16 %v649
    %v730 = vunpack.c.h.b16 %v649
    %v731 = vunpack.c.l.b16 %v650
    %v732 = vunpack.c.h.b16 %v650
    %v733 = vunpack.c.l.b16 %v651
    %v734 = vunpack.c.h.b16 %v651
    %v735 = vunpack.c.l.b16 %v652
    %v736 = vunpack.c.h.b16 %v652
    %v737 = vunpack.c.l.b16 %v653
    %v738 = vunpack.c.h.b16 %v653
    %v739 = vunpack.c.l.b16 %v654
    %v740 = vunpack.c.h.b16 %v654
    %v741 = vunpack.c.l.b16 %v655
    %v742 = vunpack.c.h.b16 %v655
    %v743 = vunpack.c.l.b16 %v656
    %v744 = vunpack.c.h.b16 %v656
    %v745 = vunpack.c.l.b16 %v657
    %v746 = vunpack.c.h.b16 %v657
    %v747 = vunpack.c.l.b16 %v658
    %v748 = vunpack.c.h.b16 %v658
    %v749 = vunpack.c.l.b16 %v659
    %v750 = vunpack.c.h.b16 %v659
    %v751 = vunpack.c.l.b16 %v660
    %v752 = vunpack.c.h.b16 %v660
    %v753 = vunpack.c.l.b16 %v661
    %v754 = vunpack.c.h.b16 %v661
    %v755 = vunpack.c.l.b16 %v662
    %v756 = vunpack.c.h.b16 %v662
    %v757 = vunpack.c.l.b16 %v663
    %v758 = vunpack.c.h.b16 %v663
    %v759 = vunpack.c.l.b16 %v664
    %v760 = vunpack.c.h.b16 %v664
    %v761 = vunpack.c.l.b16 %v665
    %v762 = vunpack.c.h.b16 %v665
    %v763 = vunpack.c.l.b16 %v666
    %v764 = vunpack.c.h.b16 %v666
    %v765 = vunpack.c.l.b16 %v667
    %v766 = vunpack.c.h.b16 %v667
    %v767 = vunpack.c.l.b16 %v668
    %v768 = vunpack.c.h.b16 %v668
    %v769 = vunpack.c.l.b16 %v669
    %v770 = vunpack.c.h.b16 %v669
    %v771 = vunpack.c.l.b16 %v670
    %v772 = vunpack.c.h.b16 %v670
    %v773 = vunpack.c.l.b16 %v671
    %v774 = vunpack.c.h.b16 %v671
    %v775 = vunpack.c.l.b16 %v672
    %v776 = vunpack.c.h.b16 %v672
    %v777 = vunpack.c.l.b16 %v673
    %v778 = vunpack.c.h.b16 %v673
    %v779 = vunpack.c.l.b16 %v674
    %v780 = vunpack.c.h.b16 %v674
    %v781 = vunpack.c.l.b16 %v675
    %v782 = vunpack.c.h.b16 %v675
    %v783 = vpack.c.b16 %v721, %v719
    %v784 = vpack.c.b16 %v722, %v720
    %v785 = vpack.c.b16 %v725, %v723
    %v786 = vpack.c.b16 %v726, %v724
    %v787 = vpack.c.b16 %v729, %v727
    %v788 = vpack.c.b16 %v730, %v728
    %v789 = vpack.c.b16 %v733, %v731
    %v790 = vpack.c.b16 %v734, %v732
    %v791 = vpack.c.b16 %v737, %v735
    %v792 = vpack.c.b16 %v738, %v736
    %v793 = vpack.c.b16 %v741, %v739
    %v794 = vpack.c.b16 %v742, %v740
    %v795 = vpack.c.b16 %v745, %v743
    %v796 = vpack.c.b16 %v746, %v744
    %v797 = vpack.c.b16 %v749, %v747
    %v798 = vpack.c.b16 %v750, %v748
    %v799 = vpack.c.b16 %v753, %v751
    %v800 = vpack.c.b16 %v754, %v752
    %v801 = vpack.c.b16 %v757, %v755
    %v802 = vpack.c.b16 %v758, %v756
    %v803 = vpack.c.b16 %v761, %v759
    %v804 = vpack.c.b16 %v762, %v760
    %v805 = vpack.c.b16 %v765, %v763
    %v806 = vpack.c.b16 %v766, %v764
    %v807 = vpack.c.b16 %v769, %v767
    %v808 = vpack.c.b16 %v770, %v768
    %v809 = vpack.c.b16 %v773, %v771
    %v810 = vpack.c.b16 %v774, %v772
    %v811 = vpack.c.b16 %v777, %v775
    %v812 = vpack.c.b16 %v778, %v776
    %v813 = vpack.c.b16 %v781, %v779
    %v814 = vpack.c.b16 %v782, %v780
    %847 = vmatprep.subr.bf16.mxu0 %v784
    %848 = vmatpush1.bf16.msra.mxu0 %v783
    %849 = vmatprep.subr.bf16.mxu0 %v786
    %850 = vmatpush1.bf16.msra.mxu0 %v785
    %851 = vmatprep.subr.bf16.mxu0 %v788
    %852 = vmatpush1.bf16.msra.mxu0 %v787
    %853 = vmatprep.subr.bf16.mxu0 %v790
    %854 = vmatpush1.bf16.msra.mxu0 %v789
    %855 = vmatprep.subr.bf16.mxu0 %v792
    %856 = vmatpush1.bf16.msra.mxu0 %v791
    %857 = vmatprep.subr.bf16.mxu0 %v794
    %858 = vmatpush1.bf16.msra.mxu0 %v793
    %859 = vmatprep.subr.bf16.mxu0 %v796
    %860 = vmatpush1.bf16.msra.mxu0 %v795
    %861 = vmatprep.subr.bf16.mxu0 %v798
    %862 = vmatpush1.bf16.msra.mxu0 %v797
    %863 = vmatprep.subr.bf16.mxu0 %v800
    %864 = vmatpush1.bf16.msra.mxu0 %v799
    %865 = vmatprep.subr.bf16.mxu0 %v802
    %866 = vmatpush1.bf16.msra.mxu0 %v801
    %867 = vmatprep.subr.bf16.mxu0 %v804
    %868 = vmatpush1.bf16.msra.mxu0 %v803
    %869 = vmatprep.subr.bf16.mxu0 %v806
    %870 = vmatpush1.bf16.msra.mxu0 %v805
    %871 = vmatprep.subr.bf16.mxu0 %v808
    %872 = vmatpush1.bf16.msra.mxu0 %v807
    %873 = vmatprep.subr.bf16.mxu0 %v810
    %874 = vmatpush1.bf16.msra.mxu0 %v809
    %875 = vmatprep.subr.bf16.mxu0 %v812
    %876 = vmatpush1.bf16.msra.mxu0 %v811
    %877 = vmatprep.subr.bf16.mxu0 %v814
    %878 = vmatpush1.bf16.msra.mxu0 %v813
    %879 = vmatprep.mubr.bf16.mxu0 %v613
    %880 = vmatmul.mubr.bf16.gmra.mrb[0].mxu0 %v612
    %v881 = vpop.f32.mrb[0].mxu0
    %v882 = vadd.f32 %v680, %v881
    %v883 = vpop.f32.mrb[0].mxu0
    %v884 = vadd.f32 %v684, %v883
    %v885 = vpop.f32.mrb[0].mxu0
    %v886 = vadd.f32 %v680, %v885
    %v887 = vpop.f32.mrb[0].mxu0
    %v888 = vadd.f32 %v684, %v887
    %889 = vmatprep.mubr.bf16.mxu0 %v615
    %890 = vmatmul.mubr.bf16.gmra.mrb[0].mxu0 %v614
    %v891 = vpop.f32.mrb[0].mxu0
    %v892 = vadd.f32 %v680, %v891
    %v893 = vpop.f32.mrb[0].mxu0
    %v894 = vadd.f32 %v684, %v893
    %v895 = vpop.f32.mrb[0].mxu0
    %v896 = vadd.f32 %v680, %v895
    %v897 = vpop.f32.mrb[0].mxu0
    %v898 = vadd.f32 %v684, %v897
    %899 = vmatprep.mubr.bf16.mxu0 %v617
    %900 = vmatmul.mubr.bf16.gmra.mrb[0].mxu0 %v616
    %v901 = vpop.f32.mrb[0].mxu0
    %v902 = vadd.f32 %v680, %v901
    %v903 = vpop.f32.mrb[0].mxu0
    %v904 = vadd.f32 %v684, %v903
    %v905 = vpop.f32.mrb[0].mxu0
    %v906 = vadd.f32 %v680, %v905
    %v907 = vpop.f32.mrb[0].mxu0
    %v908 = vadd.f32 %v684, %v907
    %909 = vmatprep.mubr.bf16.mxu0 %v619
    %910 = vmatmul.mubr.bf16.gmra.mrb[0].mxu0 %v618
    %v911 = vpop.f32.mrb[0].mxu0
    %v912 = vadd.f32 %v680, %v911
    %v913 = vpop.f32.mrb[0].mxu0
    %v914 = vadd.f32 %v684, %v913
    %v915 = vpop.f32.mrb[0].mxu0
    %v916 = vadd.f32 %v680, %v915
    %v917 = vpop.f32.mrb[0].mxu0
    %v918 = vadd.f32 %v684, %v917
    %919 = vmatprep.mubr.bf16.mxu0 %v621
    %920 = vmatmul.mubr.bf16.gmra.mrb[0].mxu0 %v620
    %v921 = vpop.f32.mrb[0].mxu0
    %v922 = vadd.f32 %v680, %v921
    %v923 = vpop.f32.mrb[0].mxu0
    %v924 = vadd.f32 %v684, %v923
    %v925 = vpop.f32.mrb[0].mxu0
    %v926 = vadd.f32 %v680, %v925
    %v927 = vpop.f32.mrb[0].mxu0
    %v928 = vadd.f32 %v684, %v927
    %929 = vmatprep.mubr.bf16.mxu0 %v623
    %930 = vmatmul.mubr.bf16.gmra.mrb[0].mxu0 %v622
    %v931 = vpop.f32.mrb[0].mxu0
    %v932 = vadd.f32 %v680, %v931
    %v933 = vpop.f32.mrb[0].mxu0
    %v934 = vadd.f32 %v684, %v933
    %v935 = vpop.f32.mrb[0].mxu0
    %v936 = vadd.f32 %v680, %v935
    %v937 = vpop.f32.mrb[0].mxu0
    %v938 = vadd.f32 %v684, %v937
    %939 = vmatprep.mubr.bf16.mxu0 %v625
    %940 = vmatmul.mubr.bf16.gmra.mrb[0].mxu0 %v624
    %v941 = vpop.f32.mrb[0].mxu0
    %v942 = vadd.f32 %v680, %v941
    %v943 = vpop.f32.mrb[0].mxu0
    %v944 = vadd.f32 %v684, %v943
    %v945 = vpop.f32.mrb[0].mxu0
    %v946 = vadd.f32 %v680, %v945
    %v947 = vpop.f32.mrb[0].mxu0
    %v948 = vadd.f32 %v684, %v947
    %949 = vmatprep.mubr.bf16.mxu0 %v627
    %950 = vmatmul.mubr.bf16.gmra.mrb[0].mxu0 %v626
    %v951 = vpop.f32.mrb[0].mxu0
    %v952 = vadd.f32 %v680, %v951
    %v953 = vpop.f32.mrb[0].mxu0
    %v954 = vadd.f32 %v684, %v953
    %v955 = vpop.f32.mrb[0].mxu0
    %v956 = vadd.f32 %v680, %v955
    %v957 = vpop.f32.mrb[0].mxu0
    %v958 = vadd.f32 %v684, %v957
    %959 = vmatprep.mubr.bf16.mxu0 %v629
    %960 = vmatmul.mubr.bf16.gmra.mrb[0].mxu0 %v628
    %v961 = vpop.f32.mrb[0].mxu0
    %v962 = vadd.f32 %v680, %v961
    %v963 = vpop.f32.mrb[0].mxu0
    %v964 = vadd.f32 %v684, %v963
    %v965 = vpop.f32.mrb[0].mxu0
    %v966 = vadd.f32 %v680, %v965
    %v967 = vpop.f32.mrb[0].mxu0
    %v968 = vadd.f32 %v684, %v967
    %969 = vmatprep.mubr.bf16.mxu0 %v631
    %970 = vmatmul.mubr.bf16.gmra.mrb[0].mxu0 %v630
    %v971 = vpop.f32.mrb[0].mxu0
    %v972 = vadd.f32 %v680, %v971
    %v973 = vpop.f32.mrb[0].mxu0
    %v974 = vadd.f32 %v684, %v973
    %v975 = vpop.f32.mrb[0].mxu0
    %v976 = vadd.f32 %v680, %v975
    %v977 = vpop.f32.mrb[0].mxu0
    %v978 = vadd.f32 %v684, %v977
    %979 = vmatprep.mubr.bf16.mxu0 %v633
    %980 = vmatmul.mubr.bf16.gmra.mrb[0].mxu0 %v632
    %v981 = vpop.f32.mrb[0].mxu0
    %v982 = vadd.f32 %v680, %v981
    %v983 = vpop.f32.mrb[0].mxu0
    %v984 = vadd.f32 %v684, %v983
    %v985 = vpop.f32.mrb[0].mxu0
    %v986 = vadd.f32 %v680, %v985
    %v987 = vpop.f32.mrb[0].mxu0
    %v988 = vadd.f32 %v684, %v987
    %989 = vmatprep.mubr.bf16.mxu0 %v635
    %990 = vmatmul.mubr.bf16.gmra.mrb[0].mxu0 %v634
    %v991 = vpop.f32.mrb[0].mxu0
    %v992 = vadd.f32 %v680, %v991
    %v993 = vpop.f32.mrb[0].mxu0
    %v994 = vadd.f32 %v684, %v993
    %v995 = vpop.f32.mrb[0].mxu0
    %v996 = vadd.f32 %v680, %v995
    %v997 = vpop.f32.mrb[0].mxu0
    %v998 = vadd.f32 %v684, %v997
    %999 = vmatprep.mubr.bf16.mxu0 %v637
    %1000 = vmatmul.mubr.bf16.gmra.mrb[0].mxu0 %v636
    %v1001 = vpop.f32.mrb[0].mxu0
    %v1002 = vadd.f32 %v680, %v1001
    %v1003 = vpop.f32.mrb[0].mxu0
    %v1004 = vadd.f32 %v684, %v1003
    %v1005 = vpop.f32.mrb[0].mxu0
    %v1006 = vadd.f32 %v680, %v1005
    %v1007 = vpop.f32.mrb[0].mxu0
    %v1008 = vadd.f32 %v684, %v1007
    %1009 = vmatprep.mubr.bf16.mxu0 %v639
    %1010 = vmatmul.mubr.bf16.gmra.mrb[0].mxu0 %v638
    %v1011 = vpop.f32.mrb[0].mxu0
    %v1012 = vadd.f32 %v680, %v1011
    %v1013 = vpop.f32.mrb[0].mxu0
    %v1014 = vadd.f32 %v684, %v1013
    %v1015 = vpop.f32.mrb[0].mxu0
    %v1016 = vadd.f32 %v680, %v1015
    %v1017 = vpop.f32.mrb[0].mxu0
    %v1018 = vadd.f32 %v684, %v1017
    %1019 = vmatprep.mubr.bf16.mxu0 %v641
    %1020 = vmatmul.mubr.bf16.gmra.mrb[0].mxu0 %v640
    %v1021 = vpop.f32.mrb[0].mxu0
    %v1022 = vadd.f32 %v680, %v1021
    %v1023 = vpop.f32.mrb[0].mxu0
    %v1024 = vadd.f32 %v684, %v1023
    %v1025 = vpop.f32.mrb[0].mxu0
    %v1026 = vadd.f32 %v680, %v1025
    %v1027 = vpop.f32.mrb[0].mxu0
    %v1028 = vadd.f32 %v684, %v1027
    %1029 = vmatprep.mubr.bf16.mxu0 %v643
    %1030 = vmatmul.mubr.bf16.gmra.mrb[0].mxu0 %v642
    %v1031 = vpop.f32.mrb[0].mxu0
    %v1032 = vadd.f32 %v680, %v1031
    %v1033 = vpop.f32.mrb[0].mxu0
    %v1034 = vadd.f32 %v684, %v1033
    %v1035 = vpop.f32.mrb[0].mxu0
    %v1036 = vadd.f32 %v680, %v1035
    %v1037 = vpop.f32.mrb[0].mxu0
    %v1038 = vadd.f32 %v684, %v1037
    %1039 = vdwg.mxu0
    %v1040 = vmax.f32 %v882, 0.0
    %v1041 = vmax.f32 %v884, 0.0
    %v1042 = vmax.f32 %v886, 0.0
    %v1043 = vmax.f32 %v888, 0.0
    %v1044 = vmax.f32 %v892, 0.0
    %v1045 = vmax.f32 %v894, 0.0
    %v1046 = vmax.f32 %v896, 0.0
    %v1047 = vmax.f32 %v898, 0.0
    %v1048 = vmax.f32 %v902, 0.0
    %v1049 = vmax.f32 %v904, 0.0
    %v1050 = vmax.f32 %v906, 0.0
    %v1051 = vmax.f32 %v908, 0.0
    %v1052 = vmax.f32 %v912, 0.0
    %v1053 = vmax.f32 %v914, 0.0
    %v1054 = vmax.f32 %v916, 0.0
    %v1055 = vmax.f32 %v918, 0.0
    %v1056 = vmax.f32 %v922, 0.0
    %v1057 = vmax.f32 %v924, 0.0
    %v1058 = vmax.f32 %v926, 0.0
    %v1059 = vmax.f32 %v928, 0.0
    %v1060 = vmax.f32 %v932, 0.0
    %v1061 = vmax.f32 %v934, 0.0
    %v1062 = vmax.f32 %v936, 0.0
    %v1063 = vmax.f32 %v938, 0.0
    %v1064 = vmax.f32 %v942, 0.0
    %v1065 = vmax.f32 %v944, 0.0
    %v1066 = vmax.f32 %v946, 0.0
    %v1067 = vmax.f32 %v948, 0.0
    %v1068 = vmax.f32 %v952, 0.0
    %v1069 = vmax.f32 %v954, 0.0
    %v1070 = vmax.f32 %v956, 0.0
    %v1071 = vmax.f32 %v958, 0.0
    %v1072 = vmax.f32 %v962, 0.0
    %v1073 = vmax.f32 %v964, 0.0
    %v1074 = vmax.f32 %v966, 0.0
    %v1075 = vmax.f32 %v968, 0.0
    %v1076 = vmax.f32 %v972, 0.0
    %v1077 = vmax.f32 %v974, 0.0
    %v1078 = vmax.f32 %v976, 0.0
    %v1079 = vmax.f32 %v978, 0.0
    %v1080 = vmax.f32 %v982, 0.0
    %v1081 = vmax.f32 %v984, 0.0
    %v1082 = vmax.f32 %v986, 0.0
    %v1083 = vmax.f32 %v988, 0.0
    %v1084 = vmax.f32 %v992, 0.0
    %v1085 = vmax.f32 %v994, 0.0
    %v1086 = vmax.f32 %v996, 0.0
    %v1087 = vmax.f32 %v998, 0.0
    %v1088 = vmax.f32 %v1002, 0.0
    %v1089 = vmax.f32 %v1004, 0.0
    %v1090 = vmax.f32 %v1006, 0.0
    %v1091 = vmax.f32 %v1008, 0.0
    %v1092 = vmax.f32 %v1012, 0.0
    %v1093 = vmax.f32 %v1014, 0.0
    %v1094 = vmax.f32 %v1016, 0.0
    %v1095 = vmax.f32 %v1018, 0.0
    %v1096 = vmax.f32 %v1022, 0.0
    %v1097 = vmax.f32 %v1024, 0.0
    %v1098 = vmax.f32 %v1026, 0.0
    %v1099 = vmax.f32 %v1028, 0.0
    %v1100 = vmax.f32 %v1032, 0.0
    %v1101 = vmax.f32 %v1034, 0.0
    %v1102 = vmax.f32 %v1036, 0.0
    %v1103 = vmax.f32 %v1038, 0.0
    %v1105 = vlaneseq
    %v1106 = vshrl.u32 %v1105, 7
    %v1107 = vsub.s32 0, %v1106
    %v1108 = vrot.slane %v202, %v1107
    %v1109 = vlaneseq
    %v1110 = vshrl.u32 %v1109, 7
    %v1111 = vsub.s32 1, %v1110
    %v1112 = vrot.slane %v202, %v1111
    %v1115 = vmul.f32 %v1040, %v1108
    %v1116 = vmul.f32 %v1041, %v1112
    %v1117 = vmul.f32 %v1042, %v1108
    %v1118 = vmul.f32 %v1043, %v1112
    %v1119 = vmul.f32 %v1044, %v1108
    %v1120 = vmul.f32 %v1045, %v1112
    %v1121 = vmul.f32 %v1046, %v1108
    %v1122 = vmul.f32 %v1047, %v1112
    %v1123 = vmul.f32 %v1048, %v1108
    %v1124 = vmul.f32 %v1049, %v1112
    %v1125 = vmul.f32 %v1050, %v1108
    %v1126 = vmul.f32 %v1051, %v1112
    %v1127 = vmul.f32 %v1052, %v1108
    %v1128 = vmul.f32 %v1053, %v1112
    %v1129 = vmul.f32 %v1054, %v1108
    %v1130 = vmul.f32 %v1055, %v1112
    %v1131 = vmul.f32 %v1056, %v1108
    %v1132 = vmul.f32 %v1057, %v1112
    %v1133 = vmul.f32 %v1058, %v1108
    %v1134 = vmul.f32 %v1059, %v1112
    %v1135 = vmul.f32 %v1060, %v1108
    %v1136 = vmul.f32 %v1061, %v1112
    %v1137 = vmul.f32 %v1062, %v1108
    %v1138 = vmul.f32 %v1063, %v1112
    %v1139 = vmul.f32 %v1064, %v1108
    %v1140 = vmul.f32 %v1065, %v1112
    %v1141 = vmul.f32 %v1066, %v1108
    %v1142 = vmul.f32 %v1067, %v1112
    %v1143 = vmul.f32 %v1068, %v1108
    %v1144 = vmul.f32 %v1069, %v1112
    %v1145 = vmul.f32 %v1070, %v1108
    %v1146 = vmul.f32 %v1071, %v1112
    %v1147 = vmul.f32 %v1072, %v1108
    %v1148 = vmul.f32 %v1073, %v1112
    %v1149 = vmul.f32 %v1074, %v1108
    %v1150 = vmul.f32 %v1075, %v1112
    %v1151 = vmul.f32 %v1076, %v1108
    %v1152 = vmul.f32 %v1077, %v1112
    %v1153 = vmul.f32 %v1078, %v1108
    %v1154 = vmul.f32 %v1079, %v1112
    %v1155 = vmul.f32 %v1080, %v1108
    %v1156 = vmul.f32 %v1081, %v1112
    %v1157 = vmul.f32 %v1082, %v1108
    %v1158 = vmul.f32 %v1083, %v1112
    %v1159 = vmul.f32 %v1084, %v1108
    %v1160 = vmul.f32 %v1085, %v1112
    %v1161 = vmul.f32 %v1086, %v1108
    %v1162 = vmul.f32 %v1087, %v1112
    %v1163 = vmul.f32 %v1088, %v1108
    %v1164 = vmul.f32 %v1089, %v1112
    %v1165 = vmul.f32 %v1090, %v1108
    %v1166 = vmul.f32 %v1091, %v1112
    %v1167 = vmul.f32 %v1092, %v1108
    %v1168 = vmul.f32 %v1093, %v1112
    %v1169 = vmul.f32 %v1094, %v1108
    %v1170 = vmul.f32 %v1095, %v1112
    %v1171 = vmul.f32 %v1096, %v1108
    %v1172 = vmul.f32 %v1097, %v1112
    %v1173 = vmul.f32 %v1098, %v1108
    %v1174 = vmul.f32 %v1099, %v1112
    %v1175 = vmul.f32 %v1100, %v1108
    %v1176 = vmul.f32 %v1101, %v1112
    %v1177 = vmul.f32 %v1102, %v1108
    %v1178 = vmul.f32 %v1103, %v1112
    %v1179 = vadd.f32 %v1115, %v1116
    %1180 = vadd.xlane.f32.xlu0 %v1179
    %v1181 = vpop.xlane.xlu0 %1180
    %v1182 = vadd.f32 %v1117, %v1118
    %1183 = vadd.xlane.f32.xlu0 %v1182
    %v1184 = vpop.xlane.xlu0 %1183
    %v1185 = vadd.f32 %v1119, %v1120
    %1186 = vadd.xlane.f32.xlu0 %v1185
    %v1187 = vpop.xlane.xlu0 %1186
    %v1188 = vadd.f32 %v1121, %v1122
    %1189 = vadd.xlane.f32.xlu0 %v1188
    %v1190 = vpop.xlane.xlu0 %1189
    %v1191 = vadd.f32 %v1123, %v1124
    %1192 = vadd.xlane.f32.xlu0 %v1191
    %v1193 = vpop.xlane.xlu0 %1192
    %v1194 = vadd.f32 %v1125, %v1126
    %1195 = vadd.xlane.f32.xlu0 %v1194
    %v1196 = vpop.xlane.xlu0 %1195
    %v1197 = vadd.f32 %v1127, %v1128
    %1198 = vadd.xlane.f32.xlu0 %v1197
    %v1199 = vpop.xlane.xlu0 %1198
    %v1200 = vadd.f32 %v1129, %v1130
    %1201 = vadd.xlane.f32.xlu0 %v1200
    %v1202 = vpop.xlane.xlu0 %1201
    %v1203 = vadd.f32 %v1131, %v1132
    %1204 = vadd.xlane.f32.xlu0 %v1203
    %v1205 = vpop.xlane.xlu0 %1204
    %v1206 = vadd.f32 %v1133, %v1134
    %1207 = vadd.xlane.f32.xlu0 %v1206
    %v1208 = vpop.xlane.xlu0 %1207
    %v1209 = vadd.f32 %v1135, %v1136
    %1210 = vadd.xlane.f32.xlu0 %v1209
    %v1211 = vpop.xlane.xlu0 %1210
    %v1212 = vadd.f32 %v1137, %v1138
    %1213 = vadd.xlane.f32.xlu0 %v1212
    %v1214 = vpop.xlane.xlu0 %1213
    %v1215 = vadd.f32 %v1139, %v1140
    %1216 = vadd.xlane.f32.xlu0 %v1215
    %v1217 = vpop.xlane.xlu0 %1216
    %v1218 = vadd.f32 %v1141, %v1142
    %1219 = vadd.xlane.f32.xlu0 %v1218
    %v1220 = vpop.xlane.xlu0 %1219
    %v1221 = vadd.f32 %v1143, %v1144
    %1222 = vadd.xlane.f32.xlu0 %v1221
    %v1223 = vpop.xlane.xlu0 %1222
    %v1224 = vadd.f32 %v1145, %v1146
    %1225 = vadd.xlane.f32.xlu0 %v1224
    %v1226 = vpop.xlane.xlu0 %1225
    %v1227 = vadd.f32 %v1147, %v1148
    %1228 = vadd.xlane.f32.xlu0 %v1227
    %v1229 = vpop.xlane.xlu0 %1228
    %v1230 = vadd.f32 %v1149, %v1150
    %1231 = vadd.xlane.f32.xlu0 %v1230
    %v1232 = vpop.xlane.xlu0 %1231
    %v1233 = vadd.f32 %v1151, %v1152
    %1234 = vadd.xlane.f32.xlu0 %v1233
    %v1235 = vpop.xlane.xlu0 %1234
    %v1236 = vadd.f32 %v1153, %v1154
    %1237 = vadd.xlane.f32.xlu0 %v1236
    %v1238 = vpop.xlane.xlu0 %1237
    %v1239 = vadd.f32 %v1155, %v1156
    %1240 = vadd.xlane.f32.xlu0 %v1239
    %v1241 = vpop.xlane.xlu0 %1240
    %v1242 = vadd.f32 %v1157, %v1158
    %1243 = vadd.xlane.f32.xlu0 %v1242
    %v1244 = vpop.xlane.xlu0 %1243
    %v1245 = vadd.f32 %v1159, %v1160
    %1246 = vadd.xlane.f32.xlu0 %v1245
    %v1247 = vpop.xlane.xlu0 %1246
    %v1248 = vadd.f32 %v1161, %v1162
    %1249 = vadd.xlane.f32.xlu0 %v1248
    %v1250 = vpop.xlane.xlu0 %1249
    %v1251 = vadd.f32 %v1163, %v1164
    %1252 = vadd.xlane.f32.xlu0 %v1251
    %v1253 = vpop.xlane.xlu0 %1252
    %v1254 = vadd.f32 %v1165, %v1166
    %1255 = vadd.xlane.f32.xlu0 %v1254
    %v1256 = vpop.xlane.xlu0 %1255
    %v1257 = vadd.f32 %v1167, %v1168
    %1258 = vadd.xlane.f32.xlu0 %v1257
    %v1259 = vpop.xlane.xlu0 %1258
    %v1260 = vadd.f32 %v1169, %v1170
    %1261 = vadd.xlane.f32.xlu0 %v1260
    %v1262 = vpop.xlane.xlu0 %1261
    %v1263 = vadd.f32 %v1171, %v1172
    %1264 = vadd.xlane.f32.xlu0 %v1263
    %v1265 = vpop.xlane.xlu0 %1264
    %v1266 = vadd.f32 %v1173, %v1174
    %1267 = vadd.xlane.f32.xlu0 %v1266
    %v1268 = vpop.xlane.xlu0 %1267
    %v1269 = vadd.f32 %v1175, %v1176
    %1270 = vadd.xlane.f32.xlu0 %v1269
    %v1271 = vpop.xlane.xlu0 %1270
    %v1272 = vadd.f32 %v1177, %v1178
    %1273 = vadd.xlane.f32.xlu0 %v1272
    %v1274 = vpop.xlane.xlu0 %1273
    %v1275 = vstv %s165
    %v1276 = vadd.f32 %v1181, %v1275
    %v1277 = vadd.f32 %v1184, %v1275
    %v1278 = vadd.f32 %v1187, %v1275
    %v1279 = vadd.f32 %v1190, %v1275
    %v1280 = vadd.f32 %v1193, %v1275
    %v1281 = vadd.f32 %v1196, %v1275
    %v1282 = vadd.f32 %v1199, %v1275
    %v1283 = vadd.f32 %v1202, %v1275
    %v1284 = vadd.f32 %v1205, %v1275
    %v1285 = vadd.f32 %v1208, %v1275
    %v1286 = vadd.f32 %v1211, %v1275
    %v1287 = vadd.f32 %v1214, %v1275
    %v1288 = vadd.f32 %v1217, %v1275
    %v1289 = vadd.f32 %v1220, %v1275
    %v1290 = vadd.f32 %v1223, %v1275
    %v1291 = vadd.f32 %v1226, %v1275
    %v1292 = vadd.f32 %v1229, %v1275
    %v1293 = vadd.f32 %v1232, %v1275
    %v1294 = vadd.f32 %v1235, %v1275
    %v1295 = vadd.f32 %v1238, %v1275
    %v1296 = vadd.f32 %v1241, %v1275
    %v1297 = vadd.f32 %v1244, %v1275
    %v1298 = vadd.f32 %v1247, %v1275
    %v1299 = vadd.f32 %v1250, %v1275
    %v1300 = vadd.f32 %v1253, %v1275
    %v1301 = vadd.f32 %v1256, %v1275
    %v1302 = vadd.f32 %v1259, %v1275
    %v1303 = vadd.f32 %v1262, %v1275
    %v1304 = vadd.f32 %v1265, %v1275
    %v1305 = vadd.f32 %v1268, %v1275
    %v1306 = vadd.f32 %v1271, %v1275
    %v1307 = vadd.f32 %v1274, %v1275
    %v1308 = vld [vmem:[#allocation10 + $0x8] sm:$0x77]
    %v1309 = vld [vmem:[#allocation12 + $0x2] sm:$0x3]
    %v1310 = vld [vmem:[#allocation16 + $0x2] sm:$0x3]
    %s1311 = scalar_lea.vmem [#allocation18], 1
    %v1312 = vld [vmem:[%s1311] ss:$2 sm:$0x3]
    %v1314 = vlaneseq
    %v1315 = vshrl.u32 %v1314, 7
    %v1316 = vsub.s32 0, %v1315
    %v1317 = vrot.slane %v1309, %v1316
    %v1318 = vlaneseq
    %v1319 = vshrl.u32 %v1318, 7
    %v1320 = vsub.s32 1, %v1319
    %v1321 = vrot.slane %v1309, %v1320
    %v1325 = vunpack.c.l.b16 %v1308
    %v1326 = vunpack.c.h.b16 %v1308
    %v1327 = vpack.c.b16 %v1325, %v1325
    %v1328 = vpack.c.b16 %v1326, %v1326
    %v1330 = vsel %vm348, %v1327, 0
    %v1333 = vsel %vm348, %v1328, 0
    %1335 = vmatprep.subr.bf16.mxu0 %v1333
    %1336 = vmatpush1.bf16.msra.mxu0 %v1330
    %1337 = vmatprep.subr.bf16.mxu0 0
    %1338 = vmatpush1.bf16.msra.mxu0 0
    %1339 = vmatprep.subr.bf16.mxu0 0
    %1340 = vmatpush1.bf16.msra.mxu0 0
    %1341 = vmatprep.subr.bf16.mxu0 0
    %1342 = vmatpush1.bf16.msra.mxu0 0
    %1343 = vmatprep.subr.bf16.mxu0 0
    %1344 = vmatpush1.bf16.msra.mxu0 0
    %1345 = vmatprep.subr.bf16.mxu0 0
    %1346 = vmatpush1.bf16.msra.mxu0 0
    %1347 = vmatprep.subr.bf16.mxu0 0
    %1348 = vmatpush1.bf16.msra.mxu0 0
    %1349 = vmatprep.subr.bf16.mxu0 0
    %1350 = vmatpush1.bf16.msra.mxu0 0
    %1351 = vmatprep.subr.bf16.mxu0 0
    %1352 = vmatpush1.bf16.msra.mxu0 0
    %1353 = vmatprep.subr.bf16.mxu0 0
    %1354 = vmatpush1.bf16.msra.mxu0 0
    %1355 = vmatprep.subr.bf16.mxu0 0
    %1356 = vmatpush1.bf16.msra.mxu0 0
    %1357 = vmatprep.subr.bf16.mxu0 0
    %1358 = vmatpush1.bf16.msra.mxu0 0
    %1359 = vmatprep.subr.bf16.mxu0 0
    %1360 = vmatpush1.bf16.msra.mxu0 0
    %1361 = vmatprep.subr.bf16.mxu0 0
    %1362 = vmatpush1.bf16.msra.mxu0 0
    %1363 = vmatprep.subr.bf16.mxu0 0
    %1364 = vmatpush1.bf16.msra.mxu0 0
    %1365 = vmatprep.subr.bf16.mxu0 0
    %1366 = vmatpush1.bf16.msra.mxu0 0
    %1367 = vmatprep.mubr.bf16.mxu0 0
    %1368 = vmatmul.mubr.bf16.gmra.mrb[0].mxu0 %v301
    %v1369 = vpop.f32.mrb[0].mxu0
    %v1370 = vadd.f32 %v1317, %v1369
    %v1371 = vpop.f32.mrb[0].mxu0
    %v1372 = vadd.f32 %v1321, %v1371
    %v1373 = vpop.f32.mrb[0].mxu0
    %v1374 = vadd.f32 %v1317, %v1373
    %v1375 = vpop.f32.mrb[0].mxu0
    %v1376 = vadd.f32 %v1321, %v1375
    %1377 = vmatprep.mubr.bf16.mxu0 0
    %1378 = vmatmul.mubr.bf16.gmra.mrb[0].mxu0 %v304
    %v1379 = vpop.f32.mrb[0].mxu0
    %v1380 = vadd.f32 %v1317, %v1379
    %v1381 = vpop.f32.mrb[0].mxu0
    %v1382 = vadd.f32 %v1321, %v1381
    %v1383 = vpop.f32.mrb[0].mxu0
    %v1384 = vadd.f32 %v1317, %v1383
    %v1385 = vpop.f32.mrb[0].mxu0
    %v1386 = vadd.f32 %v1321, %v1385
    %1387 = vmatprep.mubr.bf16.mxu0 0
    %1388 = vmatmul.mubr.bf16.gmra.mrb[0].mxu0 %v307
    %v1389 = vpop.f32.mrb[0].mxu0
    %v1390 = vadd.f32 %v1317, %v1389
    %v1391 = vpop.f32.mrb[0].mxu0
    %v1392 = vadd.f32 %v1321, %v1391
    %v1393 = vpop.f32.mrb[0].mxu0
    %v1394 = vadd.f32 %v1317, %v1393
    %v1395 = vpop.f32.mrb[0].mxu0
    %v1396 = vadd.f32 %v1321, %v1395
    %1397 = vmatprep.mubr.bf16.mxu0 0
    %1398 = vmatmul.mubr.bf16.gmra.mrb[0].mxu0 %v310
    %v1399 = vpop.f32.mrb[0].mxu0
    %v1400 = vadd.f32 %v1317, %v1399
    %v1401 = vpop.f32.mrb[0].mxu0
    %v1402 = vadd.f32 %v1321, %v1401
    %v1403 = vpop.f32.mrb[0].mxu0
    %v1404 = vadd.f32 %v1317, %v1403
    %v1405 = vpop.f32.mrb[0].mxu0
    %v1406 = vadd.f32 %v1321, %v1405
    %1407 = vmatprep.mubr.bf16.mxu0 0
    %1408 = vmatmul.mubr.bf16.gmra.mrb[0].mxu0 %v313
    %v1409 = vpop.f32.mrb[0].mxu0
    %v1410 = vadd.f32 %v1317, %v1409
    %v1411 = vpop.f32.mrb[0].mxu0
    %v1412 = vadd.f32 %v1321, %v1411
    %v1413 = vpop.f32.mrb[0].mxu0
    %v1414 = vadd.f32 %v1317, %v1413
    %v1415 = vpop.f32.mrb[0].mxu0
    %v1416 = vadd.f32 %v1321, %v1415
    %1417 = vmatprep.mubr.bf16.mxu0 0
    %1418 = vmatmul.mubr.bf16.gmra.mrb[0].mxu0 %v316
    %v1419 = vpop.f32.mrb[0].mxu0
    %v1420 = vadd.f32 %v1317, %v1419
    %v1421 = vpop.f32.mrb[0].mxu0
    %v1422 = vadd.f32 %v1321, %v1421
    %v1423 = vpop.f32.mrb[0].mxu0
    %v1424 = vadd.f32 %v1317, %v1423
    %v1425 = vpop.f32.mrb[0].mxu0
    %v1426 = vadd.f32 %v1321, %v1425
    %1427 = vmatprep.mubr.bf16.mxu0 0
    %1428 = vmatmul.mubr.bf16.gmra.mrb[0].mxu0 %v319
    %v1429 = vpop.f32.mrb[0].mxu0
    %v1430 = vadd.f32 %v1317, %v1429
    %v1431 = vpop.f32.mrb[0].mxu0
    %v1432 = vadd.f32 %v1321, %v1431
    %v1433 = vpop.f32.mrb[0].mxu0
    %v1434 = vadd.f32 %v1317, %v1433
    %v1435 = vpop.f32.mrb[0].mxu0
    %v1436 = vadd.f32 %v1321, %v1435
    %1437 = vmatprep.mubr.bf16.mxu0 0
    %1438 = vmatmul.mubr.bf16.gmra.mrb[0].mxu0 %v322
    %v1439 = vpop.f32.mrb[0].mxu0
    %v1440 = vadd.f32 %v1317, %v1439
    %v1441 = vpop.f32.mrb[0].mxu0
    %v1442 = vadd.f32 %v1321, %v1441
    %v1443 = vpop.f32.mrb[0].mxu0
    %v1444 = vadd.f32 %v1317, %v1443
    %v1445 = vpop.f32.mrb[0].mxu0
    %v1446 = vadd.f32 %v1321, %v1445
    %1447 = vmatprep.mubr.bf16.mxu0 0
    %1448 = vmatmul.mubr.bf16.gmra.mrb[0].mxu0 %v325
    %v1449 = vpop.f32.mrb[0].mxu0
    %v1450 = vadd.f32 %v1317, %v1449
    %v1451 = vpop.f32.mrb[0].mxu0
    %v1452 = vadd.f32 %v1321, %v1451
    %v1453 = vpop.f32.mrb[0].mxu0
    %v1454 = vadd.f32 %v1317, %v1453
    %v1455 = vpop.f32.mrb[0].mxu0
    %v1456 = vadd.f32 %v1321, %v1455
    %1457 = vmatprep.mubr.bf16.mxu0 0
    %1458 = vmatmul.mubr.bf16.gmra.mrb[0].mxu0 %v328
    %v1459 = vpop.f32.mrb[0].mxu0
    %v1460 = vadd.f32 %v1317, %v1459
    %v1461 = vpop.f32.mrb[0].mxu0
    %v1462 = vadd.f32 %v1321, %v1461
    %v1463 = vpop.f32.mrb[0].mxu0
    %v1464 = vadd.f32 %v1317, %v1463
    %v1465 = vpop.f32.mrb[0].mxu0
    %v1466 = vadd.f32 %v1321, %v1465
    %1467 = vmatprep.mubr.bf16.mxu0 0
    %1468 = vmatmul.mubr.bf16.gmra.mrb[0].mxu0 %v331
    %v1469 = vpop.f32.mrb[0].mxu0
    %v1470 = vadd.f32 %v1317, %v1469
    %v1471 = vpop.f32.mrb[0].mxu0
    %v1472 = vadd.f32 %v1321, %v1471
    %v1473 = vpop.f32.mrb[0].mxu0
    %v1474 = vadd.f32 %v1317, %v1473
    %v1475 = vpop.f32.mrb[0].mxu0
    %v1476 = vadd.f32 %v1321, %v1475
    %1477 = vmatprep.mubr.bf16.mxu0 0
    %1478 = vmatmul.mubr.bf16.gmra.mrb[0].mxu0 %v334
    %v1479 = vpop.f32.mrb[0].mxu0
    %v1480 = vadd.f32 %v1317, %v1479
    %v1481 = vpop.f32.mrb[0].mxu0
    %v1482 = vadd.f32 %v1321, %v1481
    %v1483 = vpop.f32.mrb[0].mxu0
    %v1484 = vadd.f32 %v1317, %v1483
    %v1485 = vpop.f32.mrb[0].mxu0
    %v1486 = vadd.f32 %v1321, %v1485
    %1487 = vmatprep.mubr.bf16.mxu0 0
    %1488 = vmatmul.mubr.bf16.gmra.mrb[0].mxu0 %v337
    %v1489 = vpop.f32.mrb[0].mxu0
    %v1490 = vadd.f32 %v1317, %v1489
    %v1491 = vpop.f32.mrb[0].mxu0
    %v1492 = vadd.f32 %v1321, %v1491
    %v1493 = vpop.f32.mrb[0].mxu0
    %v1494 = vadd.f32 %v1317, %v1493
    %v1495 = vpop.f32.mrb[0].mxu0
    %v1496 = vadd.f32 %v1321, %v1495
    %1497 = vmatprep.mubr.bf16.mxu0 0
    %1498 = vmatmul.mubr.bf16.gmra.mrb[0].mxu0 %v340
    %v1499 = vpop.f32.mrb[0].mxu0
    %v1500 = vadd.f32 %v1317, %v1499
    %v1501 = vpop.f32.mrb[0].mxu0
    %v1502 = vadd.f32 %v1321, %v1501
    %v1503 = vpop.f32.mrb[0].mxu0
    %v1504 = vadd.f32 %v1317, %v1503
    %v1505 = vpop.f32.mrb[0].mxu0
    %v1506 = vadd.f32 %v1321, %v1505
    %1507 = vmatprep.mubr.bf16.mxu0 0
    %1508 = vmatmul.mubr.bf16.gmra.mrb[0].mxu0 %v343
    %v1509 = vpop.f32.mrb[0].mxu0
    %v1510 = vadd.f32 %v1317, %v1509
    %v1511 = vpop.f32.mrb[0].mxu0
    %v1512 = vadd.f32 %v1321, %v1511
    %v1513 = vpop.f32.mrb[0].mxu0
    %v1514 = vadd.f32 %v1317, %v1513
    %v1515 = vpop.f32.mrb[0].mxu0
    %v1516 = vadd.f32 %v1321, %v1515
    %1517 = vmatprep.mubr.bf16.mxu0 0
    %1518 = vmatmul.mubr.bf16.gmra.mrb[0].mxu0 %v346
    %v1519 = vpop.f32.mrb[0].mxu0
    %v1520 = vadd.f32 %v1317, %v1519
    %v1521 = vpop.f32.mrb[0].mxu0
    %v1522 = vadd.f32 %v1321, %v1521
    %v1523 = vpop.f32.mrb[0].mxu0
    %v1524 = vadd.f32 %v1317, %v1523
    %v1525 = vpop.f32.mrb[0].mxu0
    %v1526 = vadd.f32 %v1321, %v1525
    %1527 = vdwg.mxu0
    %v1528 = vmax.f32 %v1370, 0.0
    %v1529 = vmax.f32 %v1372, 0.0
    %v1530 = vmax.f32 %v1374, 0.0
    %v1531 = vmax.f32 %v1376, 0.0
    %v1532 = vmax.f32 %v1380, 0.0
    %v1533 = vmax.f32 %v1382, 0.0
    %v1534 = vmax.f32 %v1384, 0.0
    %v1535 = vmax.f32 %v1386, 0.0
    %v1536 = vmax.f32 %v1390, 0.0
    %v1537 = vmax.f32 %v1392, 0.0
    %v1538 = vmax.f32 %v1394, 0.0
    %v1539 = vmax.f32 %v1396, 0.0
    %v1540 = vmax.f32 %v1400, 0.0
    %v1541 = vmax.f32 %v1402, 0.0
    %v1542 = vmax.f32 %v1404, 0.0
    %v1543 = vmax.f32 %v1406, 0.0
    %v1544 = vmax.f32 %v1410, 0.0
    %v1545 = vmax.f32 %v1412, 0.0
    %v1546 = vmax.f32 %v1414, 0.0
    %v1547 = vmax.f32 %v1416, 0.0
    %v1548 = vmax.f32 %v1420, 0.0
    %v1549 = vmax.f32 %v1422, 0.0
    %v1550 = vmax.f32 %v1424, 0.0
    %v1551 = vmax.f32 %v1426, 0.0
    %v1552 = vmax.f32 %v1430, 0.0
    %v1553 = vmax.f32 %v1432, 0.0
    %v1554 = vmax.f32 %v1434, 0.0
    %v1555 = vmax.f32 %v1436, 0.0
    %v1556 = vmax.f32 %v1440, 0.0
    %v1557 = vmax.f32 %v1442, 0.0
    %v1558 = vmax.f32 %v1444, 0.0
    %v1559 = vmax.f32 %v1446, 0.0
    %v1560 = vmax.f32 %v1450, 0.0
    %v1561 = vmax.f32 %v1452, 0.0
    %v1562 = vmax.f32 %v1454, 0.0
    %v1563 = vmax.f32 %v1456, 0.0
    %v1564 = vmax.f32 %v1460, 0.0
    %v1565 = vmax.f32 %v1462, 0.0
    %v1566 = vmax.f32 %v1464, 0.0
    %v1567 = vmax.f32 %v1466, 0.0
    %v1568 = vmax.f32 %v1470, 0.0
    %v1569 = vmax.f32 %v1472, 0.0
    %v1570 = vmax.f32 %v1474, 0.0
    %v1571 = vmax.f32 %v1476, 0.0
    %v1572 = vmax.f32 %v1480, 0.0
    %v1573 = vmax.f32 %v1482, 0.0
    %v1574 = vmax.f32 %v1484, 0.0
    %v1575 = vmax.f32 %v1486, 0.0
    %v1576 = vmax.f32 %v1490, 0.0
    %v1577 = vmax.f32 %v1492, 0.0
    %v1578 = vmax.f32 %v1494, 0.0
    %v1579 = vmax.f32 %v1496, 0.0
    %v1580 = vmax.f32 %v1500, 0.0
    %v1581 = vmax.f32 %v1502, 0.0
    %v1582 = vmax.f32 %v1504, 0.0
    %v1583 = vmax.f32 %v1506, 0.0
    %v1584 = vmax.f32 %v1510, 0.0
    %v1585 = vmax.f32 %v1512, 0.0
    %v1586 = vmax.f32 %v1514, 0.0
    %v1587 = vmax.f32 %v1516, 0.0
    %v1588 = vmax.f32 %v1520, 0.0
    %v1589 = vmax.f32 %v1522, 0.0
    %v1590 = vmax.f32 %v1524, 0.0
    %v1591 = vmax.f32 %v1526, 0.0
    %v1592 = vpack.c.bf16 %v1530, %v1528
    %v1593 = vpack.c.bf16 %v1531, %v1529
    %v1594 = vpack.c.bf16 %v1534, %v1532
    %v1595 = vpack.c.bf16 %v1535, %v1533
    %v1596 = vpack.c.bf16 %v1538, %v1536
    %v1597 = vpack.c.bf16 %v1539, %v1537
    %v1598 = vpack.c.bf16 %v1542, %v1540
    %v1599 = vpack.c.bf16 %v1543, %v1541
    %v1600 = vpack.c.bf16 %v1546, %v1544
    %v1601 = vpack.c.bf16 %v1547, %v1545
    %v1602 = vpack.c.bf16 %v1550, %v1548
    %v1603 = vpack.c.bf16 %v1551, %v1549
    %v1604 = vpack.c.bf16 %v1554, %v1552
    %v1605 = vpack.c.bf16 %v1555, %v1553
    %v1606 = vpack.c.bf16 %v1558, %v1556
    %v1607 = vpack.c.bf16 %v1559, %v1557
    %v1608 = vpack.c.bf16 %v1562, %v1560
    %v1609 = vpack.c.bf16 %v1563, %v1561
    %v1610 = vpack.c.bf16 %v1566, %v1564
    %v1611 = vpack.c.bf16 %v1567, %v1565
    %v1612 = vpack.c.bf16 %v1570, %v1568
    %v1613 = vpack.c.bf16 %v1571, %v1569
    %v1614 = vpack.c.bf16 %v1574, %v1572
    %v1615 = vpack.c.bf16 %v1575, %v1573
    %v1616 = vpack.c.bf16 %v1578, %v1576
    %v1617 = vpack.c.bf16 %v1579, %v1577
    %v1618 = vpack.c.bf16 %v1582, %v1580
    %v1619 = vpack.c.bf16 %v1583, %v1581
    %v1620 = vpack.c.bf16 %v1586, %v1584
    %v1621 = vpack.c.bf16 %v1587, %v1585
    %v1622 = vpack.c.bf16 %v1590, %v1588
    %v1623 = vpack.c.bf16 %v1591, %v1589
    %v1624 = vld [vmem:[#allocation15] sm:$0xff]
    %v1625 = vld [vmem:[#allocation15 + $0x8] sm:$0xff]
    %v1626 = vld [vmem:[#allocation15 + $0x10] sm:$0xff]
    %v1627 = vld [vmem:[#allocation15 + $0x18] sm:$0xff]
    %v1628 = vld [vmem:[#allocation15 + $0x20] sm:$0xff]
    %v1629 = vld [vmem:[#allocation15 + $0x28] sm:$0xff]
    %v1630 = vld [vmem:[#allocation15 + $0x30] sm:$0xff]
    %v1631 = vld [vmem:[#allocation15 + $0x38] sm:$0xff]
    %v1632 = vld [vmem:[#allocation15 + $0x40] sm:$0xff]
    %v1633 = vld [vmem:[#allocation15 + $0x48] sm:$0xff]
    %v1634 = vld [vmem:[#allocation15 + $0x50] sm:$0xff]
    %v1635 = vld [vmem:[#allocation15 + $0x58] sm:$0xff]
    %v1636 = vld [vmem:[#allocation15 + $0x60] sm:$0xff]
    %v1637 = vld [vmem:[#allocation15 + $0x68] sm:$0xff]
    %v1638 = vld [vmem:[#allocation15 + $0x70] sm:$0xff]
    %v1639 = vld [vmem:[#allocation15 + $0x78] sm:$0xff]
    %v1640 = vld [vmem:[#allocation15 + $0x80] sm:$0xff]
    %v1641 = vld [vmem:[#allocation15 + $0x88] sm:$0xff]
    %v1642 = vld [vmem:[#allocation15 + $0x90] sm:$0xff]
    %v1643 = vld [vmem:[#allocation15 + $0x98] sm:$0xff]
    %v1644 = vld [vmem:[#allocation15 + $0xa0] sm:$0xff]
    %v1645 = vld [vmem:[#allocation15 + $0xa8] sm:$0xff]
    %v1646 = vld [vmem:[#allocation15 + $0xb0] sm:$0xff]
    %v1647 = vld [vmem:[#allocation15 + $0xb8] sm:$0xff]
    %v1648 = vld [vmem:[#allocation15 + $0xc0] sm:$0xff]
    %v1649 = vld [vmem:[#allocation15 + $0xc8] sm:$0xff]
    %v1650 = vld [vmem:[#allocation15 + $0xd0] sm:$0xff]
    %v1651 = vld [vmem:[#allocation15 + $0xd8] sm:$0xff]
    %v1652 = vld [vmem:[#allocation15 + $0xe0] sm:$0xff]
    %v1653 = vld [vmem:[#allocation15 + $0xe8] sm:$0xff]
    %v1654 = vld [vmem:[#allocation15 + $0xf0] sm:$0xff]
    %v1655 = vld [vmem:[#allocation15 + $0xf8] sm:$0xff]
    %v1657 = vlaneseq
    %v1658 = vshrl.u32 %v1657, 7
    %v1659 = vsub.s32 0, %v1658
    %v1660 = vrot.slane %v1310, %v1659
    %v1661 = vlaneseq
    %v1662 = vshrl.u32 %v1661, 7
    %v1663 = vsub.s32 1, %v1662
    %v1664 = vrot.slane %v1310, %v1663
    %v1699 = vunpack.c.l.b16 %v1624
    %v1700 = vunpack.c.h.b16 %v1624
    %v1701 = vunpack.c.l.b16 %v1625
    %v1702 = vunpack.c.h.b16 %v1625
    %v1703 = vunpack.c.l.b16 %v1626
    %v1704 = vunpack.c.h.b16 %v1626
    %v1705 = vunpack.c.l.b16 %v1627
    %v1706 = vunpack.c.h.b16 %v1627
    %v1707 = vunpack.c.l.b16 %v1628
    %v1708 = vunpack.c.h.b16 %v1628
    %v1709 = vunpack.c.l.b16 %v1629
    %v1710 = vunpack.c.h.b16 %v1629
    %v1711 = vunpack.c.l.b16 %v1630
    %v1712 = vunpack.c.h.b16 %v1630
    %v1713 = vunpack.c.l.b16 %v1631
    %v1714 = vunpack.c.h.b16 %v1631
    %v1715 = vunpack.c.l.b16 %v1632
    %v1716 = vunpack.c.h.b16 %v1632
    %v1717 = vunpack.c.l.b16 %v1633
    %v1718 = vunpack.c.h.b16 %v1633
    %v1719 = vunpack.c.l.b16 %v1634
    %v1720 = vunpack.c.h.b16 %v1634
    %v1721 = vunpack.c.l.b16 %v1635
    %v1722 = vunpack.c.h.b16 %v1635
    %v1723 = vunpack.c.l.b16 %v1636
    %v1724 = vunpack.c.h.b16 %v1636
    %v1725 = vunpack.c.l.b16 %v1637
    %v1726 = vunpack.c.h.b16 %v1637
    %v1727 = vunpack.c.l.b16 %v1638
    %v1728 = vunpack.c.h.b16 %v1638
    %v1729 = vunpack.c.l.b16 %v1639
    %v1730 = vunpack.c.h.b16 %v1639
    %v1731 = vunpack.c.l.b16 %v1640
    %v1732 = vunpack.c.h.b16 %v1640
    %v1733 = vunpack.c.l.b16 %v1641
    %v1734 = vunpack.c.h.b16 %v1641
    %v1735 = vunpack.c.l.b16 %v1642
    %v1736 = vunpack.c.h.b16 %v1642
    %v1737 = vunpack.c.l.b16 %v1643
    %v1738 = vunpack.c.h.b16 %v1643
    %v1739 = vunpack.c.l.b16 %v1644
    %v1740 = vunpack.c.h.b16 %v1644
    %v1741 = vunpack.c.l.b16 %v1645
    %v1742 = vunpack.c.h.b16 %v1645
    %v1743 = vunpack.c.l.b16 %v1646
    %v1744 = vunpack.c.h.b16 %v1646
    %v1745 = vunpack.c.l.b16 %v1647
    %v1746 = vunpack.c.h.b16 %v1647
    %v1747 = vunpack.c.l.b16 %v1648
    %v1748 = vunpack.c.h.b16 %v1648
    %v1749 = vunpack.c.l.b16 %v1649
    %v1750 = vunpack.c.h.b16 %v1649
    %v1751 = vunpack.c.l.b16 %v1650
    %v1752 = vunpack.c.h.b16 %v1650
    %v1753 = vunpack.c.l.b16 %v1651
    %v1754 = vunpack.c.h.b16 %v1651
    %v1755 = vunpack.c.l.b16 %v1652
    %v1756 = vunpack.c.h.b16 %v1652
    %v1757 = vunpack.c.l.b16 %v1653
    %v1758 = vunpack.c.h.b16 %v1653
    %v1759 = vunpack.c.l.b16 %v1654
    %v1760 = vunpack.c.h.b16 %v1654
    %v1761 = vunpack.c.l.b16 %v1655
    %v1762 = vunpack.c.h.b16 %v1655
    %v1763 = vpack.c.b16 %v1701, %v1699
    %v1764 = vpack.c.b16 %v1702, %v1700
    %v1765 = vpack.c.b16 %v1705, %v1703
    %v1766 = vpack.c.b16 %v1706, %v1704
    %v1767 = vpack.c.b16 %v1709, %v1707
    %v1768 = vpack.c.b16 %v1710, %v1708
    %v1769 = vpack.c.b16 %v1713, %v1711
    %v1770 = vpack.c.b16 %v1714, %v1712
    %v1771 = vpack.c.b16 %v1717, %v1715
    %v1772 = vpack.c.b16 %v1718, %v1716
    %v1773 = vpack.c.b16 %v1721, %v1719
    %v1774 = vpack.c.b16 %v1722, %v1720
    %v1775 = vpack.c.b16 %v1725, %v1723
    %v1776 = vpack.c.b16 %v1726, %v1724
    %v1777 = vpack.c.b16 %v1729, %v1727
    %v1778 = vpack.c.b16 %v1730, %v1728
    %v1779 = vpack.c.b16 %v1733, %v1731
    %v1780 = vpack.c.b16 %v1734, %v1732
    %v1781 = vpack.c.b16 %v1737, %v1735
    %v1782 = vpack.c.b16 %v1738, %v1736
    %v1783 = vpack.c.b16 %v1741, %v1739
    %v1784 = vpack.c.b16 %v1742, %v1740
    %v1785 = vpack.c.b16 %v1745, %v1743
    %v1786 = vpack.c.b16 %v1746, %v1744
    %v1787 = vpack.c.b16 %v1749, %v1747
    %v1788 = vpack.c.b16 %v1750, %v1748
    %v1789 = vpack.c.b16 %v1753, %v1751
    %v1790 = vpack.c.b16 %v1754, %v1752
    %v1791 = vpack.c.b16 %v1757, %v1755
    %v1792 = vpack.c.b16 %v1758, %v1756
    %v1793 = vpack.c.b16 %v1761, %v1759
    %v1794 = vpack.c.b16 %v1762, %v1760
    %1827 = vmatprep.subr.bf16.mxu0 %v1764
    %1828 = vmatpush1.bf16.msra.mxu0 %v1763
    %1829 = vmatprep.subr.bf16.mxu0 %v1766
    %1830 = vmatpush1.bf16.msra.mxu0 %v1765
    %1831 = vmatprep.subr.bf16.mxu0 %v1768
    %1832 = vmatpush1.bf16.msra.mxu0 %v1767
    %1833 = vmatprep.subr.bf16.mxu0 %v1770
    %1834 = vmatpush1.bf16.msra.mxu0 %v1769
    %1835 = vmatprep.subr.bf16.mxu0 %v1772
    %1836 = vmatpush1.bf16.msra.mxu0 %v1771
    %1837 = vmatprep.subr.bf16.mxu0 %v1774
    %1838 = vmatpush1.bf16.msra.mxu0 %v1773
    %1839 = vmatprep.subr.bf16.mxu0 %v1776
    %1840 = vmatpush1.bf16.msra.mxu0 %v1775
    %1841 = vmatprep.subr.bf16.mxu0 %v1778
    %1842 = vmatpush1.bf16.msra.mxu0 %v1777
    %1843 = vmatprep.subr.bf16.mxu0 %v1780
    %1844 = vmatpush1.bf16.msra.mxu0 %v1779
    %1845 = vmatprep.subr.bf16.mxu0 %v1782
    %1846 = vmatpush1.bf16.msra.mxu0 %v1781
    %1847 = vmatprep.subr.bf16.mxu0 %v1784
    %1848 = vmatpush1.bf16.msra.mxu0 %v1783
    %1849 = vmatprep.subr.bf16.mxu0 %v1786
    %1850 = vmatpush1.bf16.msra.mxu0 %v1785
    %1851 = vmatprep.subr.bf16.mxu0 %v1788
    %1852 = vmatpush1.bf16.msra.mxu0 %v1787
    %1853 = vmatprep.subr.bf16.mxu0 %v1790
    %1854 = vmatpush1.bf16.msra.mxu0 %v1789
    %1855 = vmatprep.subr.bf16.mxu0 %v1792
    %1856 = vmatpush1.bf16.msra.mxu0 %v1791
    %1857 = vmatprep.subr.bf16.mxu0 %v1794
    %1858 = vmatpush1.bf16.msra.mxu0 %v1793
    %1859 = vmatprep.mubr.bf16.mxu0 %v1593
    %1860 = vmatmul.mubr.bf16.gmra.mrb[0].mxu0 %v1592
    %v1861 = vpop.f32.mrb[0].mxu0
    %v1862 = vadd.f32 %v1660, %v1861
    %v1863 = vpop.f32.mrb[0].mxu0
    %v1864 = vadd.f32 %v1664, %v1863
    %v1865 = vpop.f32.mrb[0].mxu0
    %v1866 = vadd.f32 %v1660, %v1865
    %v1867 = vpop.f32.mrb[0].mxu0
    %v1868 = vadd.f32 %v1664, %v1867
    %1869 = vmatprep.mubr.bf16.mxu0 %v1595
    %1870 = vmatmul.mubr.bf16.gmra.mrb[0].mxu0 %v1594
    %v1871 = vpop.f32.mrb[0].mxu0
    %v1872 = vadd.f32 %v1660, %v1871
    %v1873 = vpop.f32.mrb[0].mxu0
    %v1874 = vadd.f32 %v1664, %v1873
    %v1875 = vpop.f32.mrb[0].mxu0
    %v1876 = vadd.f32 %v1660, %v1875
    %v1877 = vpop.f32.mrb[0].mxu0
    %v1878 = vadd.f32 %v1664, %v1877
    %1879 = vmatprep.mubr.bf16.mxu0 %v1597
    %1880 = vmatmul.mubr.bf16.gmra.mrb[0].mxu0 %v1596
    %v1881 = vpop.f32.mrb[0].mxu0
    %v1882 = vadd.f32 %v1660, %v1881
    %v1883 = vpop.f32.mrb[0].mxu0
    %v1884 = vadd.f32 %v1664, %v1883
    %v1885 = vpop.f32.mrb[0].mxu0
    %v1886 = vadd.f32 %v1660, %v1885
    %v1887 = vpop.f32.mrb[0].mxu0
    %v1888 = vadd.f32 %v1664, %v1887
    %1889 = vmatprep.mubr.bf16.mxu0 %v1599
    %1890 = vmatmul.mubr.bf16.gmra.mrb[0].mxu0 %v1598
    %v1891 = vpop.f32.mrb[0].mxu0
    %v1892 = vadd.f32 %v1660, %v1891
    %v1893 = vpop.f32.mrb[0].mxu0
    %v1894 = vadd.f32 %v1664, %v1893
    %v1895 = vpop.f32.mrb[0].mxu0
    %v1896 = vadd.f32 %v1660, %v1895
    %v1897 = vpop.f32.mrb[0].mxu0
    %v1898 = vadd.f32 %v1664, %v1897
    %1899 = vmatprep.mubr.bf16.mxu0 %v1601
    %1900 = vmatmul.mubr.bf16.gmra.mrb[0].mxu0 %v1600
    %v1901 = vpop.f32.mrb[0].mxu0
    %v1902 = vadd.f32 %v1660, %v1901
    %v1903 = vpop.f32.mrb[0].mxu0
    %v1904 = vadd.f32 %v1664, %v1903
    %v1905 = vpop.f32.mrb[0].mxu0
    %v1906 = vadd.f32 %v1660, %v1905
    %v1907 = vpop.f32.mrb[0].mxu0
    %v1908 = vadd.f32 %v1664, %v1907
    %1909 = vmatprep.mubr.bf16.mxu0 %v1603
    %1910 = vmatmul.mubr.bf16.gmra.mrb[0].mxu0 %v1602
    %v1911 = vpop.f32.mrb[0].mxu0
    %v1912 = vadd.f32 %v1660, %v1911
    %v1913 = vpop.f32.mrb[0].mxu0
    %v1914 = vadd.f32 %v1664, %v1913
    %v1915 = vpop.f32.mrb[0].mxu0
    %v1916 = vadd.f32 %v1660, %v1915
    %v1917 = vpop.f32.mrb[0].mxu0
    %v1918 = vadd.f32 %v1664, %v1917
    %1919 = vmatprep.mubr.bf16.mxu0 %v1605
    %1920 = vmatmul.mubr.bf16.gmra.mrb[0].mxu0 %v1604
    %v1921 = vpop.f32.mrb[0].mxu0
    %v1922 = vadd.f32 %v1660, %v1921
    %v1923 = vpop.f32.mrb[0].mxu0
    %v1924 = vadd.f32 %v1664, %v1923
    %v1925 = vpop.f32.mrb[0].mxu0
    %v1926 = vadd.f32 %v1660, %v1925
    %v1927 = vpop.f32.mrb[0].mxu0
    %v1928 = vadd.f32 %v1664, %v1927
    %1929 = vmatprep.mubr.bf16.mxu0 %v1607
    %1930 = vmatmul.mubr.bf16.gmra.mrb[0].mxu0 %v1606
    %v1931 = vpop.f32.mrb[0].mxu0
    %v1932 = vadd.f32 %v1660, %v1931
    %v1933 = vpop.f32.mrb[0].mxu0
    %v1934 = vadd.f32 %v1664, %v1933
    %v1935 = vpop.f32.mrb[0].mxu0
    %v1936 = vadd.f32 %v1660, %v1935
    %v1937 = vpop.f32.mrb[0].mxu0
    %v1938 = vadd.f32 %v1664, %v1937
    %1939 = vmatprep.mubr.bf16.mxu0 %v1609
    %1940 = vmatmul.mubr.bf16.gmra.mrb[0].mxu0 %v1608
    %v1941 = vpop.f32.mrb[0].mxu0
    %v1942 = vadd.f32 %v1660, %v1941
    %v1943 = vpop.f32.mrb[0].mxu0
    %v1944 = vadd.f32 %v1664, %v1943
    %v1945 = vpop.f32.mrb[0].mxu0
    %v1946 = vadd.f32 %v1660, %v1945
    %v1947 = vpop.f32.mrb[0].mxu0
    %v1948 = vadd.f32 %v1664, %v1947
    %1949 = vmatprep.mubr.bf16.mxu0 %v1611
    %1950 = vmatmul.mubr.bf16.gmra.mrb[0].mxu0 %v1610
    %v1951 = vpop.f32.mrb[0].mxu0
    %v1952 = vadd.f32 %v1660, %v1951
    %v1953 = vpop.f32.mrb[0].mxu0
    %v1954 = vadd.f32 %v1664, %v1953
    %v1955 = vpop.f32.mrb[0].mxu0
    %v1956 = vadd.f32 %v1660, %v1955
    %v1957 = vpop.f32.mrb[0].mxu0
    %v1958 = vadd.f32 %v1664, %v1957
    %1959 = vmatprep.mubr.bf16.mxu0 %v1613
    %1960 = vmatmul.mubr.bf16.gmra.mrb[0].mxu0 %v1612
    %v1961 = vpop.f32.mrb[0].mxu0
    %v1962 = vadd.f32 %v1660, %v1961
    %v1963 = vpop.f32.mrb[0].mxu0
    %v1964 = vadd.f32 %v1664, %v1963
    %v1965 = vpop.f32.mrb[0].mxu0
    %v1966 = vadd.f32 %v1660, %v1965
    %v1967 = vpop.f32.mrb[0].mxu0
    %v1968 = vadd.f32 %v1664, %v1967
    %1969 = vmatprep.mubr.bf16.mxu0 %v1615
    %1970 = vmatmul.mubr.bf16.gmra.mrb[0].mxu0 %v1614
    %v1971 = vpop.f32.mrb[0].mxu0
    %v1972 = vadd.f32 %v1660, %v1971
    %v1973 = vpop.f32.mrb[0].mxu0
    %v1974 = vadd.f32 %v1664, %v1973
    %v1975 = vpop.f32.mrb[0].mxu0
    %v1976 = vadd.f32 %v1660, %v1975
    %v1977 = vpop.f32.mrb[0].mxu0
    %v1978 = vadd.f32 %v1664, %v1977
    %1979 = vmatprep.mubr.bf16.mxu0 %v1617
    %1980 = vmatmul.mubr.bf16.gmra.mrb[0].mxu0 %v1616
    %v1981 = vpop.f32.mrb[0].mxu0
    %v1982 = vadd.f32 %v1660, %v1981
    %v1983 = vpop.f32.mrb[0].mxu0
    %v1984 = vadd.f32 %v1664, %v1983
    %v1985 = vpop.f32.mrb[0].mxu0
    %v1986 = vadd.f32 %v1660, %v1985
    %v1987 = vpop.f32.mrb[0].mxu0
    %v1988 = vadd.f32 %v1664, %v1987
    %1989 = vmatprep.mubr.bf16.mxu0 %v1619
    %1990 = vmatmul.mubr.bf16.gmra.mrb[0].mxu0 %v1618
    %v1991 = vpop.f32.mrb[0].mxu0
    %v1992 = vadd.f32 %v1660, %v1991
    %v1993 = vpop.f32.mrb[0].mxu0
    %v1994 = vadd.f32 %v1664, %v1993
    %v1995 = vpop.f32.mrb[0].mxu0
    %v1996 = vadd.f32 %v1660, %v1995
    %v1997 = vpop.f32.mrb[0].mxu0
    %v1998 = vadd.f32 %v1664, %v1997
    %1999 = vmatprep.mubr.bf16.mxu0 %v1621
    %2000 = vmatmul.mubr.bf16.gmra.mrb[0].mxu0 %v1620
    %v2001 = vpop.f32.mrb[0].mxu0
    %v2002 = vadd.f32 %v1660, %v2001
    %v2003 = vpop.f32.mrb[0].mxu0
    %v2004 = vadd.f32 %v1664, %v2003
    %v2005 = vpop.f32.mrb[0].mxu0
    %v2006 = vadd.f32 %v1660, %v2005
    %v2007 = vpop.f32.mrb[0].mxu0
    %v2008 = vadd.f32 %v1664, %v2007
    %2009 = vmatprep.mubr.bf16.mxu0 %v1623
    %2010 = vmatmul.mubr.bf16.gmra.mrb[0].mxu0 %v1622
    %v2011 = vpop.f32.mrb[0].mxu0
    %v2012 = vadd.f32 %v1660, %v2011
    %v2013 = vpop.f32.mrb[0].mxu0
    %v2014 = vadd.f32 %v1664, %v2013
    %v2015 = vpop.f32.mrb[0].mxu0
    %v2016 = vadd.f32 %v1660, %v2015
    %v2017 = vpop.f32.mrb[0].mxu0
    %v2018 = vadd.f32 %v1664, %v2017
    %2019 = vdwg.mxu0
    %v2020 = vmax.f32 %v1862, 0.0
    %v2021 = vmax.f32 %v1864, 0.0
    %v2022 = vmax.f32 %v1866, 0.0
    %v2023 = vmax.f32 %v1868, 0.0
    %v2024 = vmax.f32 %v1872, 0.0
    %v2025 = vmax.f32 %v1874, 0.0
    %v2026 = vmax.f32 %v1876, 0.0
    %v2027 = vmax.f32 %v1878, 0.0
    %v2028 = vmax.f32 %v1882, 0.0
    %v2029 = vmax.f32 %v1884, 0.0
    %v2030 = vmax.f32 %v1886, 0.0
    %v2031 = vmax.f32 %v1888, 0.0
    %v2032 = vmax.f32 %v1892, 0.0
    %v2033 = vmax.f32 %v1894, 0.0
    %v2034 = vmax.f32 %v1896, 0.0
    %v2035 = vmax.f32 %v1898, 0.0
    %v2036 = vmax.f32 %v1902, 0.0
    %v2037 = vmax.f32 %v1904, 0.0
    %v2038 = vmax.f32 %v1906, 0.0
    %v2039 = vmax.f32 %v1908, 0.0
    %v2040 = vmax.f32 %v1912, 0.0
    %v2041 = vmax.f32 %v1914, 0.0
    %v2042 = vmax.f32 %v1916, 0.0
    %v2043 = vmax.f32 %v1918, 0.0
    %v2044 = vmax.f32 %v1922, 0.0
    %v2045 = vmax.f32 %v1924, 0.0
    %v2046 = vmax.f32 %v1926, 0.0
    %v2047 = vmax.f32 %v1928, 0.0
    %v2048 = vmax.f32 %v1932, 0.0
    %v2049 = vmax.f32 %v1934, 0.0
    %v2050 = vmax.f32 %v1936, 0.0
    %v2051 = vmax.f32 %v1938, 0.0
    %v2052 = vmax.f32 %v1942, 0.0
    %v2053 = vmax.f32 %v1944, 0.0
    %v2054 = vmax.f32 %v1946, 0.0
    %v2055 = vmax.f32 %v1948, 0.0
    %v2056 = vmax.f32 %v1952, 0.0
    %v2057 = vmax.f32 %v1954, 0.0
    %v2058 = vmax.f32 %v1956, 0.0
    %v2059 = vmax.f32 %v1958, 0.0
    %v2060 = vmax.f32 %v1962, 0.0
    %v2061 = vmax.f32 %v1964, 0.0
    %v2062 = vmax.f32 %v1966, 0.0
    %v2063 = vmax.f32 %v1968, 0.0
    %v2064 = vmax.f32 %v1972, 0.0
    %v2065 = vmax.f32 %v1974, 0.0
    %v2066 = vmax.f32 %v1976, 0.0
    %v2067 = vmax.f32 %v1978, 0.0
    %v2068 = vmax.f32 %v1982, 0.0
    %v2069 = vmax.f32 %v1984, 0.0
    %v2070 = vmax.f32 %v1986, 0.0
    %v2071 = vmax.f32 %v1988, 0.0
    %v2072 = vmax.f32 %v1992, 0.0
    %v2073 = vmax.f32 %v1994, 0.0
    %v2074 = vmax.f32 %v1996, 0.0
    %v2075 = vmax.f32 %v1998, 0.0
    %v2076 = vmax.f32 %v2002, 0.0
    %v2077 = vmax.f32 %v2004, 0.0
    %v2078 = vmax.f32 %v2006, 0.0
    %v2079 = vmax.f32 %v2008, 0.0
    %v2080 = vmax.f32 %v2012, 0.0
    %v2081 = vmax.f32 %v2014, 0.0
    %v2082 = vmax.f32 %v2016, 0.0
    %v2083 = vmax.f32 %v2018, 0.0
    %v2085 = vlaneseq
    %v2086 = vshrl.u32 %v2085, 7
    %v2087 = vsub.s32 0, %v2086
    %v2088 = vrot.slane %v1312, %v2087
    %v2089 = vlaneseq
    %v2090 = vshrl.u32 %v2089, 7
    %v2091 = vsub.s32 1, %v2090
    %v2092 = vrot.slane %v1312, %v2091
    %v2095 = vmul.f32 %v2020, %v2088
    %v2096 = vmul.f32 %v2021, %v2092
    %v2097 = vmul.f32 %v2022, %v2088
    %v2098 = vmul.f32 %v2023, %v2092
    %v2099 = vmul.f32 %v2024, %v2088
    %v2100 = vmul.f32 %v2025, %v2092
    %v2101 = vmul.f32 %v2026, %v2088
    %v2102 = vmul.f32 %v2027, %v2092
    %v2103 = vmul.f32 %v2028, %v2088
    %v2104 = vmul.f32 %v2029, %v2092
    %v2105 = vmul.f32 %v2030, %v2088
    %v2106 = vmul.f32 %v2031, %v2092
    %v2107 = vmul.f32 %v2032, %v2088
    %v2108 = vmul.f32 %v2033, %v2092
    %v2109 = vmul.f32 %v2034, %v2088
    %v2110 = vmul.f32 %v2035, %v2092
    %v2111 = vmul.f32 %v2036, %v2088
    %v2112 = vmul.f32 %v2037, %v2092
    %v2113 = vmul.f32 %v2038, %v2088
    %v2114 = vmul.f32 %v2039, %v2092
    %v2115 = vmul.f32 %v2040, %v2088
    %v2116 = vmul.f32 %v2041, %v2092
    %v2117 = vmul.f32 %v2042, %v2088
    %v2118 = vmul.f32 %v2043, %v2092
    %v2119 = vmul.f32 %v2044, %v2088
    %v2120 = vmul.f32 %v2045, %v2092
    %v2121 = vmul.f32 %v2046, %v2088
    %v2122 = vmul.f32 %v2047, %v2092
    %v2123 = vmul.f32 %v2048, %v2088
    %v2124 = vmul.f32 %v2049, %v2092
    %v2125 = vmul.f32 %v2050, %v2088
    %v2126 = vmul.f32 %v2051, %v2092
    %v2127 = vmul.f32 %v2052, %v2088
    %v2128 = vmul.f32 %v2053, %v2092
    %v2129 = vmul.f32 %v2054, %v2088
    %v2130 = vmul.f32 %v2055, %v2092
    %v2131 = vmul.f32 %v2056, %v2088
    %v2132 = vmul.f32 %v2057, %v2092
    %v2133 = vmul.f32 %v2058, %v2088
    %v2134 = vmul.f32 %v2059, %v2092
    %v2135 = vmul.f32 %v2060, %v2088
    %v2136 = vmul.f32 %v2061, %v2092
    %v2137 = vmul.f32 %v2062, %v2088
    %v2138 = vmul.f32 %v2063, %v2092
    %v2139 = vmul.f32 %v2064, %v2088
    %v2140 = vmul.f32 %v2065, %v2092
    %v2141 = vmul.f32 %v2066, %v2088
    %v2142 = vmul.f32 %v2067, %v2092
    %v2143 = vmul.f32 %v2068, %v2088
    %v2144 = vmul.f32 %v2069, %v2092
    %v2145 = vmul.f32 %v2070, %v2088
    %v2146 = vmul.f32 %v2071, %v2092
    %v2147 = vmul.f32 %v2072, %v2088
    %v2148 = vmul.f32 %v2073, %v2092
    %v2149 = vmul.f32 %v2074, %v2088
    %v2150 = vmul.f32 %v2075, %v2092
    %v2151 = vmul.f32 %v2076, %v2088
    %v2152 = vmul.f32 %v2077, %v2092
    %v2153 = vmul.f32 %v2078, %v2088
    %v2154 = vmul.f32 %v2079, %v2092
    %v2155 = vmul.f32 %v2080, %v2088
    %v2156 = vmul.f32 %v2081, %v2092
    %v2157 = vmul.f32 %v2082, %v2088
    %v2158 = vmul.f32 %v2083, %v2092
    %v2159 = vadd.f32 %v2095, %v2096
    %2160 = vadd.xlane.f32.xlu0 %v2159
    %v2161 = vpop.xlane.xlu0 %2160
    %v2162 = vadd.f32 %v2097, %v2098
    %2163 = vadd.xlane.f32.xlu0 %v2162
    %v2164 = vpop.xlane.xlu0 %2163
    %v2165 = vadd.f32 %v2099, %v2100
    %2166 = vadd.xlane.f32.xlu0 %v2165
    %v2167 = vpop.xlane.xlu0 %2166
    %v2168 = vadd.f32 %v2101, %v2102
    %2169 = vadd.xlane.f32.xlu0 %v2168
    %v2170 = vpop.xlane.xlu0 %2169
    %v2171 = vadd.f32 %v2103, %v2104
    %2172 = vadd.xlane.f32.xlu0 %v2171
    %v2173 = vpop.xlane.xlu0 %2172
    %v2174 = vadd.f32 %v2105, %v2106
    %2175 = vadd.xlane.f32.xlu0 %v2174
    %v2176 = vpop.xlane.xlu0 %2175
    %v2177 = vadd.f32 %v2107, %v2108
    %2178 = vadd.xlane.f32.xlu0 %v2177
    %v2179 = vpop.xlane.xlu0 %2178
    %v2180 = vadd.f32 %v2109, %v2110
    %2181 = vadd.xlane.f32.xlu0 %v2180
    %v2182 = vpop.xlane.xlu0 %2181
    %v2183 = vadd.f32 %v2111, %v2112
    %2184 = vadd.xlane.f32.xlu0 %v2183
    %v2185 = vpop.xlane.xlu0 %2184
    %v2186 = vadd.f32 %v2113, %v2114
    %2187 = vadd.xlane.f32.xlu0 %v2186
    %v2188 = vpop.xlane.xlu0 %2187
    %v2189 = vadd.f32 %v2115, %v2116
    %2190 = vadd.xlane.f32.xlu0 %v2189
    %v2191 = vpop.xlane.xlu0 %2190
    %v2192 = vadd.f32 %v2117, %v2118
    %2193 = vadd.xlane.f32.xlu0 %v2192
    %v2194 = vpop.xlane.xlu0 %2193
    %v2195 = vadd.f32 %v2119, %v2120
    %2196 = vadd.xlane.f32.xlu0 %v2195
    %v2197 = vpop.xlane.xlu0 %2196
    %v2198 = vadd.f32 %v2121, %v2122
    %2199 = vadd.xlane.f32.xlu0 %v2198
    %v2200 = vpop.xlane.xlu0 %2199
    %v2201 = vadd.f32 %v2123, %v2124
    %2202 = vadd.xlane.f32.xlu0 %v2201
    %v2203 = vpop.xlane.xlu0 %2202
    %v2204 = vadd.f32 %v2125, %v2126
    %2205 = vadd.xlane.f32.xlu0 %v2204
    %v2206 = vpop.xlane.xlu0 %2205
    %v2207 = vadd.f32 %v2127, %v2128
    %2208 = vadd.xlane.f32.xlu0 %v2207
    %v2209 = vpop.xlane.xlu0 %2208
    %v2210 = vadd.f32 %v2129, %v2130
    %2211 = vadd.xlane.f32.xlu0 %v2210
    %v2212 = vpop.xlane.xlu0 %2211
    %v2213 = vadd.f32 %v2131, %v2132
    %2214 = vadd.xlane.f32.xlu0 %v2213
    %v2215 = vpop.xlane.xlu0 %2214
    %v2216 = vadd.f32 %v2133, %v2134
    %2217 = vadd.xlane.f32.xlu0 %v2216
    %v2218 = vpop.xlane.xlu0 %2217
    %v2219 = vadd.f32 %v2135, %v2136
    %2220 = vadd.xlane.f32.xlu0 %v2219
    %v2221 = vpop.xlane.xlu0 %2220
    %v2222 = vadd.f32 %v2137, %v2138
    %2223 = vadd.xlane.f32.xlu0 %v2222
    %v2224 = vpop.xlane.xlu0 %2223
    %v2225 = vadd.f32 %v2139, %v2140
    %2226 = vadd.xlane.f32.xlu0 %v2225
    %v2227 = vpop.xlane.xlu0 %2226
    %v2228 = vadd.f32 %v2141, %v2142
    %2229 = vadd.xlane.f32.xlu0 %v2228
    %v2230 = vpop.xlane.xlu0 %2229
    %v2231 = vadd.f32 %v2143, %v2144
    %2232 = vadd.xlane.f32.xlu0 %v2231
    %v2233 = vpop.xlane.xlu0 %2232
    %v2234 = vadd.f32 %v2145, %v2146
    %2235 = vadd.xlane.f32.xlu0 %v2234
    %v2236 = vpop.xlane.xlu0 %2235
    %v2237 = vadd.f32 %v2147, %v2148
    %2238 = vadd.xlane.f32.xlu0 %v2237
    %v2239 = vpop.xlane.xlu0 %2238
    %v2240 = vadd.f32 %v2149, %v2150
    %2241 = vadd.xlane.f32.xlu0 %v2240
    %v2242 = vpop.xlane.xlu0 %2241
    %v2243 = vadd.f32 %v2151, %v2152
    %2244 = vadd.xlane.f32.xlu0 %v2243
    %v2245 = vpop.xlane.xlu0 %2244
    %v2246 = vadd.f32 %v2153, %v2154
    %2247 = vadd.xlane.f32.xlu0 %v2246
    %v2248 = vpop.xlane.xlu0 %2247
    %v2249 = vadd.f32 %v2155, %v2156
    %2250 = vadd.xlane.f32.xlu0 %v2249
    %v2251 = vpop.xlane.xlu0 %2250
    %v2252 = vadd.f32 %v2157, %v2158
    %2253 = vadd.xlane.f32.xlu0 %v2252
    %v2254 = vpop.xlane.xlu0 %2253
    %v2255 = vstv %s166
    %v2256 = vadd.f32 %v2161, %v2255
    %v2257 = vadd.f32 %v2164, %v2255
    %v2258 = vadd.f32 %v2167, %v2255
    %v2259 = vadd.f32 %v2170, %v2255
    %v2260 = vadd.f32 %v2173, %v2255
    %v2261 = vadd.f32 %v2176, %v2255
    %v2262 = vadd.f32 %v2179, %v2255
    %v2263 = vadd.f32 %v2182, %v2255
    %v2264 = vadd.f32 %v2185, %v2255
    %v2265 = vadd.f32 %v2188, %v2255
    %v2266 = vadd.f32 %v2191, %v2255
    %v2267 = vadd.f32 %v2194, %v2255
    %v2268 = vadd.f32 %v2197, %v2255
    %v2269 = vadd.f32 %v2200, %v2255
    %v2270 = vadd.f32 %v2203, %v2255
    %v2271 = vadd.f32 %v2206, %v2255
    %v2272 = vadd.f32 %v2209, %v2255
    %v2273 = vadd.f32 %v2212, %v2255
    %v2274 = vadd.f32 %v2215, %v2255
    %v2275 = vadd.f32 %v2218, %v2255
    %v2276 = vadd.f32 %v2221, %v2255
    %v2277 = vadd.f32 %v2224, %v2255
    %v2278 = vadd.f32 %v2227, %v2255
    %v2279 = vadd.f32 %v2230, %v2255
    %v2280 = vadd.f32 %v2233, %v2255
    %v2281 = vadd.f32 %v2236, %v2255
    %v2282 = vadd.f32 %v2239, %v2255
    %v2283 = vadd.f32 %v2242, %v2255
    %v2284 = vadd.f32 %v2245, %v2255
    %v2285 = vadd.f32 %v2248, %v2255
    %v2286 = vadd.f32 %v2251, %v2255
    %v2287 = vadd.f32 %v2254, %v2255
    %s2288 = ssub.f32 %s162, 1.0
    %s2289 = smax.f32 %s2288, 0.1
    %v2290 = vstv %s2289
    %v2291 = vrcp.pop %v2290
    %s2292 = vtos %v2291
    %s2293 = smul.f32 %s162, %s2292
    %v2294 = vld [vmem:[#allocation6] sm:$0xff]
    %v2295 = vld [vmem:[#allocation6 + $0x8] sm:$0xff]
    %v2296 = vld [vmem:[#allocation6 + $0x10] sm:$0xff]
    %v2297 = vld [vmem:[#allocation6 + $0x18] sm:$0xff]
    %v2298 = vld [vmem:[#allocation6 + $0x20] sm:$0xff]
    %v2299 = vld [vmem:[#allocation6 + $0x28] sm:$0xff]
    %v2300 = vld [vmem:[#allocation6 + $0x30] sm:$0xff]
    %v2301 = vld [vmem:[#allocation6 + $0x38] sm:$0xff]
    %v2302 = vld [vmem:[#allocation6 + $0x40] sm:$0xff]
    %v2303 = vld [vmem:[#allocation6 + $0x48] sm:$0xff]
    %v2304 = vld [vmem:[#allocation6 + $0x50] sm:$0xff]
    %v2305 = vld [vmem:[#allocation6 + $0x58] sm:$0xff]
    %v2306 = vld [vmem:[#allocation6 + $0x60] sm:$0xff]
    %v2307 = vld [vmem:[#allocation6 + $0x68] sm:$0xff]
    %v2308 = vld [vmem:[#allocation6 + $0x70] sm:$0xff]
    %v2309 = vld [vmem:[#allocation6 + $0x78] sm:$0xff]
    %v2310 = vld [vmem:[#allocation6 + $0x80] sm:$0xff]
    %v2311 = vld [vmem:[#allocation6 + $0x88] sm:$0xff]
    %v2312 = vld [vmem:[#allocation6 + $0x90] sm:$0xff]
    %v2313 = vld [vmem:[#allocation6 + $0x98] sm:$0xff]
    %v2314 = vld [vmem:[#allocation6 + $0xa0] sm:$0xff]
    %v2315 = vld [vmem:[#allocation6 + $0xa8] sm:$0xff]
    %v2316 = vld [vmem:[#allocation6 + $0xb0] sm:$0xff]
    %v2317 = vld [vmem:[#allocation6 + $0xb8] sm:$0xff]
    %v2318 = vld [vmem:[#allocation6 + $0xc0] sm:$0xff]
    %v2319 = vld [vmem:[#allocation6 + $0xc8] sm:$0xff]
    %v2320 = vld [vmem:[#allocation6 + $0xd0] sm:$0xff]
    %v2321 = vld [vmem:[#allocation6 + $0xd8] sm:$0xff]
    %v2322 = vld [vmem:[#allocation6 + $0xe0] sm:$0xff]
    %v2323 = vld [vmem:[#allocation6 + $0xe8] sm:$0xff]
    %v2324 = vld [vmem:[#allocation6 + $0xf0] sm:$0xff]
    %v2325 = vld [vmem:[#allocation6 + $0xf8] sm:$0xff]
    %v2326 = vstv %s163
    %v2327 = vmul.f32 %v2326, %v2294
    %v2328 = vmul.f32 %v2326, %v2295
    %v2329 = vmul.f32 %v2326, %v2296
    %v2330 = vmul.f32 %v2326, %v2297
    %v2331 = vmul.f32 %v2326, %v2298
    %v2332 = vmul.f32 %v2326, %v2299
    %v2333 = vmul.f32 %v2326, %v2300
    %v2334 = vmul.f32 %v2326, %v2301
    %v2335 = vmul.f32 %v2326, %v2302
    %v2336 = vmul.f32 %v2326, %v2303
    %v2337 = vmul.f32 %v2326, %v2304
    %v2338 = vmul.f32 %v2326, %v2305
    %v2339 = vmul.f32 %v2326, %v2306
    %v2340 = vmul.f32 %v2326, %v2307
    %v2341 = vmul.f32 %v2326, %v2308
    %v2342 = vmul.f32 %v2326, %v2309
    %v2343 = vmul.f32 %v2326, %v2310
    %v2344 = vmul.f32 %v2326, %v2311
    %v2345 = vmul.f32 %v2326, %v2312
    %v2346 = vmul.f32 %v2326, %v2313
    %v2347 = vmul.f32 %v2326, %v2314
    %v2348 = vmul.f32 %v2326, %v2315
    %v2349 = vmul.f32 %v2326, %v2316
    %v2350 = vmul.f32 %v2326, %v2317
    %v2351 = vmul.f32 %v2326, %v2318
    %v2352 = vmul.f32 %v2326, %v2319
    %v2353 = vmul.f32 %v2326, %v2320
    %v2354 = vmul.f32 %v2326, %v2321
    %v2355 = vmul.f32 %v2326, %v2322
    %v2356 = vmul.f32 %v2326, %v2323
    %v2357 = vmul.f32 %v2326, %v2324
    %v2358 = vmul.f32 %v2326, %v2325
    %v2359 = vstv %s2293
    %v2360 = vmul.f32 %v2359, %v2327
    %v2361 = vmul.f32 %v2359, %v2328
    %v2362 = vmul.f32 %v2359, %v2329
    %v2363 = vmul.f32 %v2359, %v2330
    %v2364 = vmul.f32 %v2359, %v2331
    %v2365 = vmul.f32 %v2359, %v2332
    %v2366 = vmul.f32 %v2359, %v2333
    %v2367 = vmul.f32 %v2359, %v2334
    %v2368 = vmul.f32 %v2359, %v2335
    %v2369 = vmul.f32 %v2359, %v2336
    %v2370 = vmul.f32 %v2359, %v2337
    %v2371 = vmul.f32 %v2359, %v2338
    %v2372 = vmul.f32 %v2359, %v2339
    %v2373 = vmul.f32 %v2359, %v2340
    %v2374 = vmul.f32 %v2359, %v2341
    %v2375 = vmul.f32 %v2359, %v2342
    %v2376 = vmul.f32 %v2359, %v2343
    %v2377 = vmul.f32 %v2359, %v2344
    %v2378 = vmul.f32 %v2359, %v2345
    %v2379 = vmul.f32 %v2359, %v2346
    %v2380 = vmul.f32 %v2359, %v2347
    %v2381 = vmul.f32 %v2359, %v2348
    %v2382 = vmul.f32 %v2359, %v2349
    %v2383 = vmul.f32 %v2359, %v2350
    %v2384 = vmul.f32 %v2359, %v2351
    %v2385 = vmul.f32 %v2359, %v2352
    %v2386 = vmul.f32 %v2359, %v2353
    %v2387 = vmul.f32 %v2359, %v2354
    %v2388 = vmul.f32 %v2359, %v2355
    %v2389 = vmul.f32 %v2359, %v2356
    %v2390 = vmul.f32 %v2359, %v2357
    %v2391 = vmul.f32 %v2359, %v2358
    %v2392 = vadd.f32 %v2360, %v1276
    %v2393 = vadd.f32 %v2361, %v1277
    %v2394 = vadd.f32 %v2362, %v1278
    %v2395 = vadd.f32 %v2363, %v1279
    %v2396 = vadd.f32 %v2364, %v1280
    %v2397 = vadd.f32 %v2365, %v1281
    %v2398 = vadd.f32 %v2366, %v1282
    %v2399 = vadd.f32 %v2367, %v1283
    %v2400 = vadd.f32 %v2368, %v1284
    %v2401 = vadd.f32 %v2369, %v1285
    %v2402 = vadd.f32 %v2370, %v1286
    %v2403 = vadd.f32 %v2371, %v1287
    %v2404 = vadd.f32 %v2372, %v1288
    %v2405 = vadd.f32 %v2373, %v1289
    %v2406 = vadd.f32 %v2374, %v1290
    %v2407 = vadd.f32 %v2375, %v1291
    %v2408 = vadd.f32 %v2376, %v1292
    %v2409 = vadd.f32 %v2377, %v1293
    %v2410 = vadd.f32 %v2378, %v1294
    %v2411 = vadd.f32 %v2379, %v1295
    %v2412 = vadd.f32 %v2380, %v1296
    %v2413 = vadd.f32 %v2381, %v1297
    %v2414 = vadd.f32 %v2382, %v1298
    %v2415 = vadd.f32 %v2383, %v1299
    %v2416 = vadd.f32 %v2384, %v1300
    %v2417 = vadd.f32 %v2385, %v1301
    %v2418 = vadd.f32 %v2386, %v1302
    %v2419 = vadd.f32 %v2387, %v1303
    %v2420 = vadd.f32 %v2388, %v1304
    %v2421 = vadd.f32 %v2389, %v1305
    %v2422 = vadd.f32 %v2390, %v1306
    %v2423 = vadd.f32 %v2391, %v1307
    %v2424 = vmax.f32 %v2392, 0.0
    %v2425 = vmax.f32 %v2393, 0.0
    %v2426 = vmax.f32 %v2394, 0.0
    %v2427 = vmax.f32 %v2395, 0.0
    %v2428 = vmax.f32 %v2396, 0.0
    %v2429 = vmax.f32 %v2397, 0.0
    %v2430 = vmax.f32 %v2398, 0.0
    %v2431 = vmax.f32 %v2399, 0.0
    %v2432 = vmax.f32 %v2400, 0.0
    %v2433 = vmax.f32 %v2401, 0.0
    %v2434 = vmax.f32 %v2402, 0.0
    %v2435 = vmax.f32 %v2403, 0.0
    %v2436 = vmax.f32 %v2404, 0.0
    %v2437 = vmax.f32 %v2405, 0.0
    %v2438 = vmax.f32 %v2406, 0.0
    %v2439 = vmax.f32 %v2407, 0.0
    %v2440 = vmax.f32 %v2408, 0.0
    %v2441 = vmax.f32 %v2409, 0.0
    %v2442 = vmax.f32 %v2410, 0.0
    %v2443 = vmax.f32 %v2411, 0.0
    %v2444 = vmax.f32 %v2412, 0.0
    %v2445 = vmax.f32 %v2413, 0.0
    %v2446 = vmax.f32 %v2414, 0.0
    %v2447 = vmax.f32 %v2415, 0.0
    %v2448 = vmax.f32 %v2416, 0.0
    %v2449 = vmax.f32 %v2417, 0.0
    %v2450 = vmax.f32 %v2418, 0.0
    %v2451 = vmax.f32 %v2419, 0.0
    %v2452 = vmax.f32 %v2420, 0.0
    %v2453 = vmax.f32 %v2421, 0.0
    %v2454 = vmax.f32 %v2422, 0.0
    %v2455 = vmax.f32 %v2423, 0.0
    %v2456 = vld [vmem:[#allocation7] sm:$0xff]
    %v2457 = vld [vmem:[#allocation7 + $0x8] sm:$0xff]
    %v2458 = vld [vmem:[#allocation7 + $0x10] sm:$0xff]
    %v2459 = vld [vmem:[#allocation7 + $0x18] sm:$0xff]
    %v2460 = vld [vmem:[#allocation7 + $0x20] sm:$0xff]
    %v2461 = vld [vmem:[#allocation7 + $0x28] sm:$0xff]
    %v2462 = vld [vmem:[#allocation7 + $0x30] sm:$0xff]
    %v2463 = vld [vmem:[#allocation7 + $0x38] sm:$0xff]
    %v2464 = vld [vmem:[#allocation7 + $0x40] sm:$0xff]
    %v2465 = vld [vmem:[#allocation7 + $0x48] sm:$0xff]
    %v2466 = vld [vmem:[#allocation7 + $0x50] sm:$0xff]
    %v2467 = vld [vmem:[#allocation7 + $0x58] sm:$0xff]
    %v2468 = vld [vmem:[#allocation7 + $0x60] sm:$0xff]
    %v2469 = vld [vmem:[#allocation7 + $0x68] sm:$0xff]
    %v2470 = vld [vmem:[#allocation7 + $0x70] sm:$0xff]
    %v2471 = vld [vmem:[#allocation7 + $0x78] sm:$0xff]
    %v2472 = vld [vmem:[#allocation7 + $0x80] sm:$0xff]
    %v2473 = vld [vmem:[#allocation7 + $0x88] sm:$0xff]
    %v2474 = vld [vmem:[#allocation7 + $0x90] sm:$0xff]
    %v2475 = vld [vmem:[#allocation7 + $0x98] sm:$0xff]
    %v2476 = vld [vmem:[#allocation7 + $0xa0] sm:$0xff]
    %v2477 = vld [vmem:[#allocation7 + $0xa8] sm:$0xff]
    %v2478 = vld [vmem:[#allocation7 + $0xb0] sm:$0xff]
    %v2479 = vld [vmem:[#allocation7 + $0xb8] sm:$0xff]
    %v2480 = vld [vmem:[#allocation7 + $0xc0] sm:$0xff]
    %v2481 = vld [vmem:[#allocation7 + $0xc8] sm:$0xff]
    %v2482 = vld [vmem:[#allocation7 + $0xd0] sm:$0xff]
    %v2483 = vld [vmem:[#allocation7 + $0xd8] sm:$0xff]
    %v2484 = vld [vmem:[#allocation7 + $0xe0] sm:$0xff]
    %v2485 = vld [vmem:[#allocation7 + $0xe8] sm:$0xff]
    %v2486 = vld [vmem:[#allocation7 + $0xf0] sm:$0xff]
    %v2487 = vld [vmem:[#allocation7 + $0xf8] sm:$0xff]
    %v2488 = vrcp.pop %v2456
    %v2489 = vmul.f32 %v2424, %v2488
    %v2490 = vrcp.pop %v2457
    %v2491 = vmul.f32 %v2425, %v2490
    %v2492 = vrcp.pop %v2458
    %v2493 = vmul.f32 %v2426, %v2492
    %v2494 = vrcp.pop %v2459
    %v2495 = vmul.f32 %v2427, %v2494
    %v2496 = vrcp.pop %v2460
    %v2497 = vmul.f32 %v2428, %v2496
    %v2498 = vrcp.pop %v2461
    %v2499 = vmul.f32 %v2429, %v2498
    %v2500 = vrcp.pop %v2462
    %v2501 = vmul.f32 %v2430, %v2500
    %v2502 = vrcp.pop %v2463
    %v2503 = vmul.f32 %v2431, %v2502
    %v2504 = vrcp.pop %v2464
    %v2505 = vmul.f32 %v2432, %v2504
    %v2506 = vrcp.pop %v2465
    %v2507 = vmul.f32 %v2433, %v2506
    %v2508 = vrcp.pop %v2466
    %v2509 = vmul.f32 %v2434, %v2508
    %v2510 = vrcp.pop %v2467
    %v2511 = vmul.f32 %v2435, %v2510
    %v2512 = vrcp.pop %v2468
    %v2513 = vmul.f32 %v2436, %v2512
    %v2514 = vrcp.pop %v2469
    %v2515 = vmul.f32 %v2437, %v2514
    %v2516 = vrcp.pop %v2470
    %v2517 = vmul.f32 %v2438, %v2516
    %v2518 = vrcp.pop %v2471
    %v2519 = vmul.f32 %v2439, %v2518
    %v2520 = vrcp.pop %v2472
    %v2521 = vmul.f32 %v2440, %v2520
    %v2522 = vrcp.pop %v2473
    %v2523 = vmul.f32 %v2441, %v2522
    %v2524 = vrcp.pop %v2474
    %v2525 = vmul.f32 %v2442, %v2524
    %v2526 = vrcp.pop %v2475
    %v2527 = vmul.f32 %v2443, %v2526
    %v2528 = vrcp.pop %v2476
    %v2529 = vmul.f32 %v2444, %v2528
    %v2530 = vrcp.pop %v2477
    %v2531 = vmul.f32 %v2445, %v2530
    %v2532 = vrcp.pop %v2478
    %v2533 = vmul.f32 %v2446, %v2532
    %v2534 = vrcp.pop %v2479
    %v2535 = vmul.f32 %v2447, %v2534
    %v2536 = vrcp.pop %v2480
    %v2537 = vmul.f32 %v2448, %v2536
    %v2538 = vrcp.pop %v2481
    %v2539 = vmul.f32 %v2449, %v2538
    %v2540 = vrcp.pop %v2482
    %v2541 = vmul.f32 %v2450, %v2540
    %v2542 = vrcp.pop %v2483
    %v2543 = vmul.f32 %v2451, %v2542
    %v2544 = vrcp.pop %v2484
    %v2545 = vmul.f32 %v2452, %v2544
    %v2546 = vrcp.pop %v2485
    %v2547 = vmul.f32 %v2453, %v2546
    %v2548 = vrcp.pop %v2486
    %v2549 = vmul.f32 %v2454, %v2548
    %v2550 = vrcp.pop %v2487
    %v2551 = vmul.f32 %v2455, %v2550
    %v2552 = vstv %s164
    %v2553 = vmul.f32 %v2489, %v2552
    %v2554 = vmul.f32 %v2491, %v2552
    %v2555 = vmul.f32 %v2493, %v2552
    %v2556 = vmul.f32 %v2495, %v2552
    %v2557 = vmul.f32 %v2497, %v2552
    %v2558 = vmul.f32 %v2499, %v2552
    %v2559 = vmul.f32 %v2501, %v2552
    %v2560 = vmul.f32 %v2503, %v2552
    %v2561 = vmul.f32 %v2505, %v2552
    %v2562 = vmul.f32 %v2507, %v2552
    %v2563 = vmul.f32 %v2509, %v2552
    %v2564 = vmul.f32 %v2511, %v2552
    %v2565 = vmul.f32 %v2513, %v2552
    %v2566 = vmul.f32 %v2515, %v2552
    %v2567 = vmul.f32 %v2517, %v2552
    %v2568 = vmul.f32 %v2519, %v2552
    %v2569 = vmul.f32 %v2521, %v2552
    %v2570 = vmul.f32 %v2523, %v2552
    %v2571 = vmul.f32 %v2525, %v2552
    %v2572 = vmul.f32 %v2527, %v2552
    %v2573 = vmul.f32 %v2529, %v2552
    %v2574 = vmul.f32 %v2531, %v2552
    %v2575 = vmul.f32 %v2533, %v2552
    %v2576 = vmul.f32 %v2535, %v2552
    %v2577 = vmul.f32 %v2537, %v2552
    %v2578 = vmul.f32 %v2539, %v2552
    %v2579 = vmul.f32 %v2541, %v2552
    %v2580 = vmul.f32 %v2543, %v2552
    %v2581 = vmul.f32 %v2545, %v2552
    %v2582 = vmul.f32 %v2547, %v2552
    %v2583 = vmul.f32 %v2549, %v2552
    %v2584 = vmul.f32 %v2551, %v2552
    %v2585 = vadd.f32 %v2553, %v2256
    %v2586 = vadd.f32 %v2554, %v2257
    %v2587 = vadd.f32 %v2555, %v2258
    %v2588 = vadd.f32 %v2556, %v2259
    %v2589 = vadd.f32 %v2557, %v2260
    %v2590 = vadd.f32 %v2558, %v2261
    %v2591 = vadd.f32 %v2559, %v2262
    %v2592 = vadd.f32 %v2560, %v2263
    %v2593 = vadd.f32 %v2561, %v2264
    %v2594 = vadd.f32 %v2562, %v2265
    %v2595 = vadd.f32 %v2563, %v2266
    %v2596 = vadd.f32 %v2564, %v2267
    %v2597 = vadd.f32 %v2565, %v2268
    %v2598 = vadd.f32 %v2566, %v2269
    %v2599 = vadd.f32 %v2567, %v2270
    %v2600 = vadd.f32 %v2568, %v2271
    %v2601 = vadd.f32 %v2569, %v2272
    %v2602 = vadd.f32 %v2570, %v2273
    %v2603 = vadd.f32 %v2571, %v2274
    %v2604 = vadd.f32 %v2572, %v2275
    %v2605 = vadd.f32 %v2573, %v2276
    %v2606 = vadd.f32 %v2574, %v2277
    %v2607 = vadd.f32 %v2575, %v2278
    %v2608 = vadd.f32 %v2576, %v2279
    %v2609 = vadd.f32 %v2577, %v2280
    %v2610 = vadd.f32 %v2578, %v2281
    %v2611 = vadd.f32 %v2579, %v2282
    %v2612 = vadd.f32 %v2580, %v2283
    %v2613 = vadd.f32 %v2581, %v2284
    %v2614 = vadd.f32 %v2582, %v2285
    %v2615 = vadd.f32 %v2583, %v2286
    %v2616 = vadd.f32 %v2584, %v2287
    %vm2617 = vcmask 7168
    %2618 = vst.msk [vmem:[#allocation19] sm:$0xff] %vm2617, %v2585
    %2619 = vst.msk [vmem:[#allocation19 + $0x8] sm:$0xff] %vm2617, %v2586
    %2620 = vst.msk [vmem:[#allocation19 + $0x10] sm:$0xff] %vm2617, %v2587
    %2621 = vst.msk [vmem:[#allocation19 + $0x18] sm:$0xff] %vm2617, %v2588
    %2622 = vst.msk [vmem:[#allocation19 + $0x20] sm:$0xff] %vm2617, %v2589
    %2623 = vst.msk [vmem:[#allocation19 + $0x28] sm:$0xff] %vm2617, %v2590
    %2624 = vst.msk [vmem:[#allocation19 + $0x30] sm:$0xff] %vm2617, %v2591
    %2625 = vst.msk [vmem:[#allocation19 + $0x38] sm:$0xff] %vm2617, %v2592
    %2626 = vst.msk [vmem:[#allocation19 + $0x40] sm:$0xff] %vm2617, %v2593
    %2627 = vst.msk [vmem:[#allocation19 + $0x48] sm:$0xff] %vm2617, %v2594
    %2628 = vst.msk [vmem:[#allocation19 + $0x50] sm:$0xff] %vm2617, %v2595
    %2629 = vst.msk [vmem:[#allocation19 + $0x58] sm:$0xff] %vm2617, %v2596
    %2630 = vst.msk [vmem:[#allocation19 + $0x60] sm:$0xff] %vm2617, %v2597
    %2631 = vst.msk [vmem:[#allocation19 + $0x68] sm:$0xff] %vm2617, %v2598
    %2632 = vst.msk [vmem:[#allocation19 + $0x70] sm:$0xff] %vm2617, %v2599
    %2633 = vst.msk [vmem:[#allocation19 + $0x78] sm:$0xff] %vm2617, %v2600
    %2634 = vst.msk [vmem:[#allocation19 + $0x80] sm:$0xff] %vm2617, %v2601
    %2635 = vst.msk [vmem:[#allocation19 + $0x88] sm:$0xff] %vm2617, %v2602
    %2636 = vst.msk [vmem:[#allocation19 + $0x90] sm:$0xff] %vm2617, %v2603
    %2637 = vst.msk [vmem:[#allocation19 + $0x98] sm:$0xff] %vm2617, %v2604
    %2638 = vst.msk [vmem:[#allocation19 + $0xa0] sm:$0xff] %vm2617, %v2605
    %2639 = vst.msk [vmem:[#allocation19 + $0xa8] sm:$0xff] %vm2617, %v2606
    %2640 = vst.msk [vmem:[#allocation19 + $0xb0] sm:$0xff] %vm2617, %v2607
    %2641 = vst.msk [vmem:[#allocation19 + $0xb8] sm:$0xff] %vm2617, %v2608
    %2642 = vst.msk [vmem:[#allocation19 + $0xc0] sm:$0xff] %vm2617, %v2609
    %2643 = vst.msk [vmem:[#allocation19 + $0xc8] sm:$0xff] %vm2617, %v2610
    %2644 = vst.msk [vmem:[#allocation19 + $0xd0] sm:$0xff] %vm2617, %v2611
    %2645 = vst.msk [vmem:[#allocation19 + $0xd8] sm:$0xff] %vm2617, %v2612
    %2646 = vst.msk [vmem:[#allocation19 + $0xe0] sm:$0xff] %vm2617, %v2613
    %2647 = vst.msk [vmem:[#allocation19 + $0xe8] sm:$0xff] %vm2617, %v2614
    %2648 = vst.msk [vmem:[#allocation19 + $0xf0] sm:$0xff] %vm2617, %v2615
    %2649 = vst.msk [vmem:[#allocation19 + $0xf8] sm:$0xff] %vm2617, %v2616
    // Predicated region
    $region82: #{tpu_custom_call.1} parent=1 // pred_check
      _
    $region83: #{tpu_custom_call.1} parent=1 // pred_check_branch
      %2651 = sbr.rel (0) target = $region85
    $region84: #{tpu_custom_call.1} parent=1 // pred_region
      %s2653 = ssub.s32 4096, 4096
      %2654 = vsyncadd [#allocation4], %s2653
      %s2655 = sshll.u32 [#allocation19], 4
      %s2656 = int_to_ptr.vmem [resolvable:$true] %s2655
      %2661 = dma.vmem_to_hbm [thread:$0]  %s2656, 4096, %s10, [#allocation4], 128, 128, 8
    $region85: #{tpu_custom_call.1} parent=1 // pred_fallthru
      _
    // Predicated region
    $region86: #{tpu_custom_call.1} parent=1 // pred_check
      _
    $region87: #{tpu_custom_call.1} parent=1 // pred_check_branch
      %2663 = sbr.rel (0) target = $region89
    $region88: #{tpu_custom_call.1} parent=1 // pred_region
      %2664 = dma.done [#allocation4], 4096
    $region89: #{tpu_custom_call.1} parent=1 // pred_fallthru
      _
    %2665 = vsyncpa [#allocation3], 1
    %2666 = vsyncpa [#allocation8], 1
    %2667 = vsyncpa [#allocation11], 1
    %2668 = vsyncpa [#allocation14], 1
    %2669 = vsyncpa [#allocation17], 1
    %2670 = vsyncpa [#allocation4], 1
    %2671 = vsyncpa [#allocation5], 1

</llo_original>
